<compile_context>
chip_gen: v5e
topology: v5e:2x2
jax: 0.10.0
libtpu: 0.0.40
codegen_flags: <defaults>
</compile_context>

<pallas_src>
import functools

import jax
import jax.numpy as jnp
from jax.experimental import pallas as pl
from jax.experimental.pallas import tpu as pltpu


def _two_layer_kernel(x_ref, w1_ref, b1_ref, w2_ref, b2_ref, w3_ref, b3_ref,
                      out_ref):
    # Batch-in-lanes layout: x tile (in, TB) f32; weights (out_f, in_f);
    # biases (out_f, 1); output tile (out, TB).
    xt = x_ref[...]                                         # (in, TB) f32
    in_size = xt.shape[0]

    # ---- Layer 1: K=in_size (=2) contraction as VPU outer-product FMAs.
    # A 2-deep MXU matmul would waste 254/256 of the contraction depth; two
    # broadcast mul+adds are free filler under the dominant 512x512 matmul.
    w1 = w1_ref[...]                                        # (enc, in) f32
    h1 = w1[:, 0:1] * xt[0:1, :]                            # (enc, TB)
    for k in range(1, in_size):                             # static unroll
        h1 = h1 + w1[:, k:k + 1] * xt[k:k + 1, :]
    h1 = jnp.maximum(h1 + b1_ref[...], 0.0)                 # f32 bias + ReLU

    # ---- Layer 2: (hid, enc) @ (enc, TB) on the MXU, bf16 operands, f32 acc.
    h2 = jnp.dot(w2_ref[...], h1.astype(jnp.bfloat16),
                 preferred_element_type=jnp.float32)        # (hid, TB)
    h2 = jnp.maximum(h2 + b2_ref[...], 0.0)

    # ---- Layer 3: (out, hid) @ (hid, TB) on the MXU; lane-dense store.
    y = jnp.dot(w3_ref[...], h2.astype(jnp.bfloat16),
                preferred_element_type=jnp.float32)         # (out, TB)
    out_ref[...] = (y + b3_ref[...]).astype(out_ref.dtype)


def _round_up(v, m):
    return -(-v // m) * m


def _choose_batch_tile(batch, batch_tile):
    """Pick the lane-axis batch tile.

    - Tiles are multiples of 128 (vreg lane width) so multi-tile BlockSpecs
      satisfy the (8, 128) constraint and stores stay unmasked.
    - If the batch would fit in a single tile but spans >= 2 lane groups,
      split into two tiles so both v7x TensorCores get work.
    """
    bp = _round_up(max(batch, 1), 128)
    tb = min(batch_tile, bp)
    if tb == bp and bp >= 256:
        tb = _round_up(-(-bp // 2), 128)
    bp = _round_up(bp, tb)
    return tb, bp


@functools.partial(jax.jit, static_argnames=("batch_tile",))
def two_layer_forward(x, params, *, batch_tile=1024):
    """x: (B, input_size) f32 -> (B, output_size) f32.

    params (PyTorch-native orientation): w1t f32 (enc, in), w2t bf16
    (hid, enc), w3t bf16 (out, hid); biases b*t f32 (out_features, 1).
    """
    w1t, b1t = params["w1t"], params["b1t"]
    w2t, b2t = params["w2t"], params["b2t"]
    w3t, b3t = params["w3t"], params["b3t"]
    B, in_size = x.shape
    out_size = w3t.shape[0]

    batch_tile = _round_up(batch_tile, 128)
    tb, Bp = _choose_batch_tile(B, batch_tile)

    # Batch-in-lanes layout: tiny (B,2)<->(2,B) transposes/pads in the
    # wrapper, negligible next to the kernel.
    xt = x.T
    if Bp != B:
        xt = jnp.pad(xt, ((0, 0), (0, Bp - B)))

    def resident(arr):
        # Constant block index -> fetched once, VMEM-resident across the grid.
        # TODO(synk): pipeline_mode=pl.Buffered(1) would drop the redundant
        # second buffer (~0.5 MiB for w2t); skipped to stay conservative.
        return pl.BlockSpec(arr.shape, lambda i: (0, 0))

    out_t = pl.pallas_call(
        _two_layer_kernel,
        out_shape=jax.ShapeDtypeStruct((out_size, Bp), jnp.float32),
        grid=(Bp // tb,),
        in_specs=[
            pl.BlockSpec((in_size, tb), lambda i: (0, i)),   # stream x tiles
            resident(w1t), resident(b1t),
            resident(w2t), resident(b2t),
            resident(w3t), resident(b3t),
        ],
        out_specs=pl.BlockSpec((out_size, tb), lambda i: (0, i)),
        compiler_params=pltpu.CompilerParams(
            dimension_semantics=("parallel",)),  # batch tiles -> both TCs on v7x
    )(xt, w1t, b1t, w2t, b2t, w3t, b3t)

    return out_t[:, :B].T


def make_params(key, input_size=2, encoding_size=512, hidden_size=512,
                output_size=2):
    """PyTorch-style uniform(+-1/sqrt(fan_in)) init, stored in kernel layout:
    weights (out_features, in_features) (PyTorch's native orientation),
    biases (out_features, 1).  Big weights bf16; first-layer weight and all
    biases f32."""
    ks = jax.random.split(key, 6)

    def lin(kw, kb, fan_in, fan_out, w_dtype):
        bound = fan_in ** -0.5
        w = jax.random.uniform(kw, (fan_out, fan_in), jnp.float32,
                               -bound, bound).astype(w_dtype)
        b = jax.random.uniform(kb, (fan_out, 1), jnp.float32, -bound, bound)
        return w, b

    w1t, b1t = lin(ks[0], ks[1], input_size, encoding_size, jnp.float32)
    w2t, b2t = lin(ks[2], ks[3], encoding_size, hidden_size, jnp.bfloat16)
    w3t, b3t = lin(ks[4], ks[5], hidden_size, output_size, jnp.bfloat16)
    return dict(w1t=w1t, b1t=b1t, w2t=w2t, b2t=b2t, w3t=w3t, b3t=b3t)


def _reference(x, params):
    """Pure-JAX reference mirroring the kernel's precision choices
    (f32 first layer, bf16-operand / f32-accumulate MXU layers)."""
    def bf(a):
        return a.astype(jnp.bfloat16).astype(jnp.float32)
    w1 = params["w1t"].T                          # (in, enc) f32
    w2 = params["w2t"].astype(jnp.float32).T      # (enc, hid)
    w3 = params["w3t"].astype(jnp.float32).T      # (hid, out)
    b1 = params["b1t"].T
    b2 = params["b2t"].T
    b3 = params["b3t"].T
    h1 = jnp.maximum(x @ w1 + b1, 0.0)
    h2 = jnp.maximum(bf(h1) @ w2 + b2, 0.0)
    return bf(h2) @ w3 + b3


if __name__ == "__main__":
    key = jax.random.PRNGKey(0)
    pkey, xkey1, xkey2 = jax.random.split(key, 3)

    params = make_params(pkey)  # input=2, enc/hid=512, out=2

    # Small batch: single 128-lane tile (padding path).
    x_small = jax.random.normal(xkey1, (8, 2), jnp.float32)
    out_small = jax.block_until_ready(two_layer_forward(x_small, params))
    assert out_small.shape == (8, 2)
    assert jnp.allclose(out_small, _reference(x_small, params),
                        atol=2e-3, rtol=2e-3)

    # Non-multiple batch: exercises padding + the 2-tile megacore split.
    x_big = jax.random.normal(xkey2, (260, 2), jnp.float32)
    out_big = jax.block_until_ready(two_layer_forward(x_big, params))
    assert out_big.shape == (260, 2)
    assert jnp.allclose(out_big, _reference(x_big, params),
                        atol=2e-3, rtol=2e-3)

    print("KERNEL_OK")
</pallas_src>

<mosaic_0001>
module attributes {stable_mosaic.version = 11 : i64} {
  func.func @_two_layer_kernel(%arg0: i32, %arg1: memref<2x128xf32, #tpu.memory_space<vmem>>, %arg2: memref<512x2xf32, #tpu.memory_space<vmem>>, %arg3: memref<512x1xf32, #tpu.memory_space<vmem>>, %arg4: memref<512x512xbf16, #tpu.memory_space<vmem>>, %arg5: memref<512x1xf32, #tpu.memory_space<vmem>>, %arg6: memref<2x512xbf16, #tpu.memory_space<vmem>>, %arg7: memref<2x1xf32, #tpu.memory_space<vmem>>, %arg8: memref<2x128xf32, #tpu.memory_space<vmem>>) attributes {dimension_semantics = [#tpu.dimension_semantics<parallel>], iteration_bounds = array<i64: 1>, scalar_prefetch = 0 : i64, scratch_operands = 0 : i64, tpu.core_type = #tpu.core_type<tc>, window_params = [{transform_indices = @transform_0, window_bounds = array<i64: 2, 128>}, {pipeline_mode = #tpu.pipeline_mode<synchronous>, transform_indices = @transform_1, window_bounds = array<i64: 512, 2>}, {pipeline_mode = #tpu.pipeline_mode<synchronous>, transform_indices = @transform_2, window_bounds = array<i64: 512, 1>}, {pipeline_mode = #tpu.pipeline_mode<synchronous>, transform_indices = @transform_3, window_bounds = array<i64: 512, 512>}, {pipeline_mode = #tpu.pipeline_mode<synchronous>, transform_indices = @transform_4, window_bounds = array<i64: 512, 1>}, {pipeline_mode = #tpu.pipeline_mode<synchronous>, transform_indices = @transform_5, window_bounds = array<i64: 2, 512>}, {pipeline_mode = #tpu.pipeline_mode<synchronous>, transform_indices = @transform_6, window_bounds = array<i64: 2, 1>}, {transform_indices = @transform_7, window_bounds = array<i64: 2, 128>}]} {
    %c0 = arith.constant 0 : index
    %c0_0 = arith.constant 0 : index
    %0 = vector.load %arg1[%c0, %c0_0] : memref<2x128xf32, #tpu.memory_space<vmem>>, vector<2x128xf32>
    %c0_1 = arith.constant 0 : index
    %c0_2 = arith.constant 0 : index
    %1 = vector.load %arg2[%c0_1, %c0_2] : memref<512x2xf32, #tpu.memory_space<vmem>>, vector<512x2xf32>
    %2 = vector.extract_strided_slice %1 {offsets = [0, 0], sizes = [512, 1], strides = [1, 1]} : vector<512x2xf32> to vector<512x1xf32>
    %3 = vector.extract_strided_slice %0 {offsets = [0, 0], sizes = [1, 128], strides = [1, 1]} : vector<2x128xf32> to vector<1x128xf32>
    %4 = vector.broadcast %2 : vector<512x1xf32> to vector<512x128xf32>
    %5 = vector.broadcast %3 : vector<1x128xf32> to vector<512x128xf32>
    %6 = arith.mulf %4, %5 : vector<512x128xf32>
    %7 = vector.extract_strided_slice %1 {offsets = [0, 1], sizes = [512, 1], strides = [1, 1]} : vector<512x2xf32> to vector<512x1xf32>
    %8 = vector.extract_strided_slice %0 {offsets = [1, 0], sizes = [1, 128], strides = [1, 1]} : vector<2x128xf32> to vector<1x128xf32>
    %9 = vector.broadcast %7 : vector<512x1xf32> to vector<512x128xf32>
    %10 = vector.broadcast %8 : vector<1x128xf32> to vector<512x128xf32>
    %11 = arith.mulf %9, %10 : vector<512x128xf32>
    %12 = arith.addf %6, %11 : vector<512x128xf32>
    %c0_3 = arith.constant 0 : index
    %c0_4 = arith.constant 0 : index
    %13 = vector.load %arg3[%c0_3, %c0_4] : memref<512x1xf32, #tpu.memory_space<vmem>>, vector<512x1xf32>
    %14 = vector.broadcast %13 : vector<512x1xf32> to vector<512x128xf32>
    %15 = arith.addf %12, %14 : vector<512x128xf32>
    %cst = arith.constant 0.000000e+00 : f32
    %16 = vector.broadcast %cst : f32 to vector<512x128xf32>
    %17 = arith.maximumf %15, %16 : vector<512x128xf32>
    %c0_5 = arith.constant 0 : index
    %c0_6 = arith.constant 0 : index
    %18 = vector.load %arg4[%c0_5, %c0_6] : memref<512x512xbf16, #tpu.memory_space<vmem>>, vector<512x512xbf16>
    %19 = arith.truncf %17 : vector<512x128xf32> to vector<512x128xbf16>
    %cst_7 = arith.constant dense<0.000000e+00> : vector<512x128xf32>
    %20 = tpu.matmul %18, %19, %cst_7 {dimension_numbers = #tpu.dot_dimension_numbers<[1], [0], [0], [1], [0, 0, 1, 1], [], []>} : vector<512x512xbf16>, vector<512x128xbf16>, vector<512x128xf32> -> vector<512x128xf32>
    %c0_8 = arith.constant 0 : index
    %c0_9 = arith.constant 0 : index
    %21 = vector.load %arg5[%c0_8, %c0_9] : memref<512x1xf32, #tpu.memory_space<vmem>>, vector<512x1xf32>
    %22 = vector.broadcast %21 : vector<512x1xf32> to vector<512x128xf32>
    %23 = arith.addf %20, %22 : vector<512x128xf32>
    %cst_10 = arith.constant 0.000000e+00 : f32
    %24 = vector.broadcast %cst_10 : f32 to vector<512x128xf32>
    %25 = arith.maximumf %23, %24 : vector<512x128xf32>
    %c0_11 = arith.constant 0 : index
    %c0_12 = arith.constant 0 : index
    %26 = vector.load %arg6[%c0_11, %c0_12] : memref<2x512xbf16, #tpu.memory_space<vmem>>, vector<2x512xbf16>
    %27 = arith.truncf %25 : vector<512x128xf32> to vector<512x128xbf16>
    %cst_13 = arith.constant dense<0.000000e+00> : vector<2x128xf32>
    %28 = tpu.matmul %26, %27, %cst_13 {dimension_numbers = #tpu.dot_dimension_numbers<[1], [0], [0], [1], [0, 0, 1, 1], [], []>} : vector<2x512xbf16>, vector<512x128xbf16>, vector<2x128xf32> -> vector<2x128xf32>
    %c0_14 = arith.constant 0 : index
    %c0_15 = arith.constant 0 : index
    %29 = vector.load %arg7[%c0_14, %c0_15] : memref<2x1xf32, #tpu.memory_space<vmem>>, vector<2x1xf32>
    %30 = vector.broadcast %29 : vector<2x1xf32> to vector<2x128xf32>
    %31 = arith.addf %28, %30 : vector<2x128xf32>
    %c0_16 = arith.constant 0 : index
    %c0_17 = arith.constant 0 : index
    %32 = vector.load %arg8[%c0_16, %c0_17] : memref<2x128xf32, #tpu.memory_space<vmem>>, vector<2x128xf32>
    tpu.vector_store %arg8[%c0_16, %c0_17], %31 {strides = array<i32>} : memref<2x128xf32, #tpu.memory_space<vmem>>, vector<2x128xf32>,
    return
  }
  func.func @transform_0(%arg0: i32) -> (i32, i32) {
    %c0_i32 = arith.constant 0 : i32
    %c0_i32_0 = arith.constant 0 : i32
    return %c0_i32, %arg0 : i32, i32
  }
  func.func @transform_1(%arg0: i32) -> (i32, i32) {
    %c0_i32 = arith.constant 0 : i32
    %c0_i32_0 = arith.constant 0 : i32
    %c0_i32_1 = arith.constant 0 : i32
    return %c0_i32, %c0_i32_0 : i32, i32
  }
  func.func @transform_2(%arg0: i32) -> (i32, i32) {
    %c0_i32 = arith.constant 0 : i32
    %c0_i32_0 = arith.constant 0 : i32
    %c0_i32_1 = arith.constant 0 : i32
    return %c0_i32, %c0_i32_0 : i32, i32
  }
  func.func @transform_3(%arg0: i32) -> (i32, i32) {
    %c0_i32 = arith.constant 0 : i32
    %c0_i32_0 = arith.constant 0 : i32
    %c0_i32_1 = arith.constant 0 : i32
    return %c0_i32, %c0_i32_0 : i32, i32
  }
  func.func @transform_4(%arg0: i32) -> (i32, i32) {
    %c0_i32 = arith.constant 0 : i32
    %c0_i32_0 = arith.constant 0 : i32
    %c0_i32_1 = arith.constant 0 : i32
    return %c0_i32, %c0_i32_0 : i32, i32
  }
  func.func @transform_5(%arg0: i32) -> (i32, i32) {
    %c0_i32 = arith.constant 0 : i32
    %c0_i32_0 = arith.constant 0 : i32
    %c0_i32_1 = arith.constant 0 : i32
    return %c0_i32, %c0_i32_0 : i32, i32
  }
  func.func @transform_6(%arg0: i32) -> (i32, i32) {
    %c0_i32 = arith.constant 0 : i32
    %c0_i32_0 = arith.constant 0 : i32
    %c0_i32_1 = arith.constant 0 : i32
    return %c0_i32, %c0_i32_0 : i32, i32
  }
  func.func @transform_7(%arg0: i32) -> (i32, i32) {
    %c0_i32 = arith.constant 0 : i32
    %c0_i32_0 = arith.constant 0 : i32
    return %c0_i32, %arg0 : i32, i32
  }
}

</mosaic_0001>

<llo_original>
// kernel: two_layer_forward.1
$region0: #{two_layer_forward.1}
  #allocation0 [shape = 'u32[]', space=smem, size = 0x4, offset = 0x4, fixed_abs, tag = 'smem constant byte address 0x4 - core index']
  #allocation1 [shape = 'u32[72,128]{1,0:T(1,128)}', space=vmem, size = 0x9000, scoped, tag = 'internal scratch']
  %s0 = inlined_call_operand.vmem [shape: f32[2,128], index: 0, kind: input, shape index: {}]
  %s1 = inlined_call_operand.vmem [shape: f32[512,2], index: 1, kind: input, shape index: {}]
  %s2 = inlined_call_operand.vmem [shape: f32[512,1], index: 2, kind: input, shape index: {}]
  %s3 = inlined_call_operand.vmem [shape: bf16[512,512], index: 3, kind: input, shape index: {}]
  %s4 = inlined_call_operand.vmem [shape: f32[512,1], index: 4, kind: input, shape index: {}]
  %s5 = inlined_call_operand.vmem [shape: bf16[2,512], index: 5, kind: input, shape index: {}]
  %s6 = inlined_call_operand.vmem [shape: f32[2,1], index: 6, kind: input, shape index: {}]
  %s7 = inlined_call_operand.vmem [shape: f32[2,128], index: 7, kind: output, shape index: {}]
  %s8 = sld [smem:[#allocation0]]
  $region38: #{two_layer_forward.1} parent=0
    _
  %s10 = ssub.s32 1, %s8
  %s11 = scalar_select 0, %s10, %s8
  // Predicated region
  $region2: #{two_layer_forward.1} parent=0 // pred_check
    _
  $region3: #{two_layer_forward.1} parent=0 // pred_check_branch
    %13 = sbr.rel (0) target = $region5
  $region4: #{two_layer_forward.1} parent=0 // pred_region
    _
  $region5: #{two_layer_forward.1} parent=0 // pred_fallthru
    _
  // Predicated region
  $region6: #{two_layer_forward.1} parent=0 // pred_check
    _
  $region7: #{two_layer_forward.1} parent=0 // pred_check_branch
    %15 = sbr.rel (0) target = $region9
  $region8: #{two_layer_forward.1} parent=0 // pred_region
    _
  $region9: #{two_layer_forward.1} parent=0 // pred_fallthru
    _
  // Predicated region
  $region10: #{two_layer_forward.1} parent=0 // pred_check
    _
  $region11: #{two_layer_forward.1} parent=0 // pred_check_branch
    %17 = sbr.rel (0) target = $region13
  $region12: #{two_layer_forward.1} parent=0 // pred_region
    _
  $region13: #{two_layer_forward.1} parent=0 // pred_fallthru
    _
  // Predicated region
  $region14: #{two_layer_forward.1} parent=0 // pred_check
    _
  $region15: #{two_layer_forward.1} parent=0 // pred_check_branch
    %19 = sbr.rel (0) target = $region17
  $region16: #{two_layer_forward.1} parent=0 // pred_region
    _
  $region17: #{two_layer_forward.1} parent=0 // pred_fallthru
    _
  // Predicated region
  $region18: #{two_layer_forward.1} parent=0 // pred_check
    _
  $region19: #{two_layer_forward.1} parent=0 // pred_check_branch
    %21 = sbr.rel (0) target = $region21
  $region20: #{two_layer_forward.1} parent=0 // pred_region
    _
  $region21: #{two_layer_forward.1} parent=0 // pred_fallthru
    _
  // Predicated region
  $region22: #{two_layer_forward.1} parent=0 // pred_check
    _
  $region23: #{two_layer_forward.1} parent=0 // pred_check_branch
    %23 = sbr.rel (0) target = $region25
  $region24: #{two_layer_forward.1} parent=0 // pred_region
    _
  $region25: #{two_layer_forward.1} parent=0 // pred_fallthru
    _
  // Predicated region
  $region26: #{two_layer_forward.1} parent=0 // pred_check
    _
  $region27: #{two_layer_forward.1} parent=0 // pred_check_branch
    %25 = sbr.rel (0) target = $region29
  $region28: #{two_layer_forward.1} parent=0 // pred_region
    _
  $region29: #{two_layer_forward.1} parent=0 // pred_fallthru
    _
  %v26 = vld [vmem:[%s0] sm:$0x3]
  %v27 = vld [vmem:[%s1] sm:$0xff]
  %v28 = vld [vmem:[%s1 + $0x8] sm:$0xff]
  %v29 = vld [vmem:[%s1 + $0x10] sm:$0xff]
  %v30 = vld [vmem:[%s1 + $0x18] sm:$0xff]
  %v31 = vld [vmem:[%s1 + $0x20] sm:$0xff]
  %v32 = vld [vmem:[%s1 + $0x28] sm:$0xff]
  %v33 = vld [vmem:[%s1 + $0x30] sm:$0xff]
  %v34 = vld [vmem:[%s1 + $0x38] sm:$0xff]
  %v35 = vld [vmem:[%s1 + $0x40] sm:$0xff]
  %v36 = vld [vmem:[%s1 + $0x48] sm:$0xff]
  %v37 = vld [vmem:[%s1 + $0x50] sm:$0xff]
  %v38 = vld [vmem:[%s1 + $0x58] sm:$0xff]
  %v39 = vld [vmem:[%s1 + $0x60] sm:$0xff]
  %v40 = vld [vmem:[%s1 + $0x68] sm:$0xff]
  %v41 = vld [vmem:[%s1 + $0x70] sm:$0xff]
  %v42 = vld [vmem:[%s1 + $0x78] sm:$0xff]
  %v43 = vld [vmem:[%s1 + $0x80] sm:$0xff]
  %v44 = vld [vmem:[%s1 + $0x88] sm:$0xff]
  %v45 = vld [vmem:[%s1 + $0x90] sm:$0xff]
  %v46 = vld [vmem:[%s1 + $0x98] sm:$0xff]
  %v47 = vld [vmem:[%s1 + $0xa0] sm:$0xff]
  %v48 = vld [vmem:[%s1 + $0xa8] sm:$0xff]
  %v49 = vld [vmem:[%s1 + $0xb0] sm:$0xff]
  %v50 = vld [vmem:[%s1 + $0xb8] sm:$0xff]
  %v51 = vld [vmem:[%s1 + $0xc0] sm:$0xff]
  %v52 = vld [vmem:[%s1 + $0xc8] sm:$0xff]
  %v53 = vld [vmem:[%s1 + $0xd0] sm:$0xff]
  %v54 = vld [vmem:[%s1 + $0xd8] sm:$0xff]
  %v55 = vld [vmem:[%s1 + $0xe0] sm:$0xff]
  %v56 = vld [vmem:[%s1 + $0xe8] sm:$0xff]
  %v57 = vld [vmem:[%s1 + $0xf0] sm:$0xff]
  %v58 = vld [vmem:[%s1 + $0xf8] sm:$0xff]
  %v59 = vld [vmem:[%s1 + $0x100] sm:$0xff]
  %v60 = vld [vmem:[%s1 + $0x108] sm:$0xff]
  %v61 = vld [vmem:[%s1 + $0x110] sm:$0xff]
  %v62 = vld [vmem:[%s1 + $0x118] sm:$0xff]
  %v63 = vld [vmem:[%s1 + $0x120] sm:$0xff]
  %v64 = vld [vmem:[%s1 + $0x128] sm:$0xff]
  %v65 = vld [vmem:[%s1 + $0x130] sm:$0xff]
  %v66 = vld [vmem:[%s1 + $0x138] sm:$0xff]
  %v67 = vld [vmem:[%s1 + $0x140] sm:$0xff]
  %v68 = vld [vmem:[%s1 + $0x148] sm:$0xff]
  %v69 = vld [vmem:[%s1 + $0x150] sm:$0xff]
  %v70 = vld [vmem:[%s1 + $0x158] sm:$0xff]
  %v71 = vld [vmem:[%s1 + $0x160] sm:$0xff]
  %v72 = vld [vmem:[%s1 + $0x168] sm:$0xff]
  %v73 = vld [vmem:[%s1 + $0x170] sm:$0xff]
  %v74 = vld [vmem:[%s1 + $0x178] sm:$0xff]
  %v75 = vld [vmem:[%s1 + $0x180] sm:$0xff]
  %v76 = vld [vmem:[%s1 + $0x188] sm:$0xff]
  %v77 = vld [vmem:[%s1 + $0x190] sm:$0xff]
  %v78 = vld [vmem:[%s1 + $0x198] sm:$0xff]
  %v79 = vld [vmem:[%s1 + $0x1a0] sm:$0xff]
  %v80 = vld [vmem:[%s1 + $0x1a8] sm:$0xff]
  %v81 = vld [vmem:[%s1 + $0x1b0] sm:$0xff]
  %v82 = vld [vmem:[%s1 + $0x1b8] sm:$0xff]
  %v83 = vld [vmem:[%s1 + $0x1c0] sm:$0xff]
  %v84 = vld [vmem:[%s1 + $0x1c8] sm:$0xff]
  %v85 = vld [vmem:[%s1 + $0x1d0] sm:$0xff]
  %v86 = vld [vmem:[%s1 + $0x1d8] sm:$0xff]
  %v87 = vld [vmem:[%s1 + $0x1e0] sm:$0xff]
  %v88 = vld [vmem:[%s1 + $0x1e8] sm:$0xff]
  %v89 = vld [vmem:[%s1 + $0x1f0] sm:$0xff]
  %v90 = vld [vmem:[%s1 + $0x1f8] sm:$0xff]
  %92 = vset.pattern.permute.xlu0 0
  %93 = vperm.xlu0 %92, %v27
  %v94 = vpop.permute.xlu0 %93
  %97 = vset.pattern.permute.xlu0 0
  %98 = vperm.xlu0 %97, %v28
  %v99 = vpop.permute.xlu0 %98
  %102 = vset.pattern.permute.xlu0 0
  %103 = vperm.xlu0 %102, %v29
  %v104 = vpop.permute.xlu0 %103
  %107 = vset.pattern.permute.xlu0 0
  %108 = vperm.xlu0 %107, %v30
  %v109 = vpop.permute.xlu0 %108
  %112 = vset.pattern.permute.xlu0 0
  %113 = vperm.xlu0 %112, %v31
  %v114 = vpop.permute.xlu0 %113
  %117 = vset.pattern.permute.xlu0 0
  %118 = vperm.xlu0 %117, %v32
  %v119 = vpop.permute.xlu0 %118
  %122 = vset.pattern.permute.xlu0 0
  %123 = vperm.xlu0 %122, %v33
  %v124 = vpop.permute.xlu0 %123
  %127 = vset.pattern.permute.xlu0 0
  %128 = vperm.xlu0 %127, %v34
  %v129 = vpop.permute.xlu0 %128
  %132 = vset.pattern.permute.xlu0 0
  %133 = vperm.xlu0 %132, %v35
  %v134 = vpop.permute.xlu0 %133
  %137 = vset.pattern.permute.xlu0 0
  %138 = vperm.xlu0 %137, %v36
  %v139 = vpop.permute.xlu0 %138
  %142 = vset.pattern.permute.xlu0 0
  %143 = vperm.xlu0 %142, %v37
  %v144 = vpop.permute.xlu0 %143
  %147 = vset.pattern.permute.xlu0 0
  %148 = vperm.xlu0 %147, %v38
  %v149 = vpop.permute.xlu0 %148
  %152 = vset.pattern.permute.xlu0 0
  %153 = vperm.xlu0 %152, %v39
  %v154 = vpop.permute.xlu0 %153
  %157 = vset.pattern.permute.xlu0 0
  %158 = vperm.xlu0 %157, %v40
  %v159 = vpop.permute.xlu0 %158
  %162 = vset.pattern.permute.xlu0 0
  %163 = vperm.xlu0 %162, %v41
  %v164 = vpop.permute.xlu0 %163
  %167 = vset.pattern.permute.xlu0 0
  %168 = vperm.xlu0 %167, %v42
  %v169 = vpop.permute.xlu0 %168
  %172 = vset.pattern.permute.xlu0 0
  %173 = vperm.xlu0 %172, %v43
  %v174 = vpop.permute.xlu0 %173
  %177 = vset.pattern.permute.xlu0 0
  %178 = vperm.xlu0 %177, %v44
  %v179 = vpop.permute.xlu0 %178
  %182 = vset.pattern.permute.xlu0 0
  %183 = vperm.xlu0 %182, %v45
  %v184 = vpop.permute.xlu0 %183
  %187 = vset.pattern.permute.xlu0 0
  %188 = vperm.xlu0 %187, %v46
  %v189 = vpop.permute.xlu0 %188
  %192 = vset.pattern.permute.xlu0 0
  %193 = vperm.xlu0 %192, %v47
  %v194 = vpop.permute.xlu0 %193
  %197 = vset.pattern.permute.xlu0 0
  %198 = vperm.xlu0 %197, %v48
  %v199 = vpop.permute.xlu0 %198
  %202 = vset.pattern.permute.xlu0 0
  %203 = vperm.xlu0 %202, %v49
  %v204 = vpop.permute.xlu0 %203
  %207 = vset.pattern.permute.xlu0 0
  %208 = vperm.xlu0 %207, %v50
  %v209 = vpop.permute.xlu0 %208
  %212 = vset.pattern.permute.xlu0 0
  %213 = vperm.xlu0 %212, %v51
  %v214 = vpop.permute.xlu0 %213
  %217 = vset.pattern.permute.xlu0 0
  %218 = vperm.xlu0 %217, %v52
  %v219 = vpop.permute.xlu0 %218
  %222 = vset.pattern.permute.xlu0 0
  %223 = vperm.xlu0 %222, %v53
  %v224 = vpop.permute.xlu0 %223
  %227 = vset.pattern.permute.xlu0 0
  %228 = vperm.xlu0 %227, %v54
  %v229 = vpop.permute.xlu0 %228
  %232 = vset.pattern.permute.xlu0 0
  %233 = vperm.xlu0 %232, %v55
  %v234 = vpop.permute.xlu0 %233
  %237 = vset.pattern.permute.xlu0 0
  %238 = vperm.xlu0 %237, %v56
  %v239 = vpop.permute.xlu0 %238
  %242 = vset.pattern.permute.xlu0 0
  %243 = vperm.xlu0 %242, %v57
  %v244 = vpop.permute.xlu0 %243
  %247 = vset.pattern.permute.xlu0 0
  %248 = vperm.xlu0 %247, %v58
  %v249 = vpop.permute.xlu0 %248
  %252 = vset.pattern.permute.xlu0 0
  %253 = vperm.xlu0 %252, %v59
  %v254 = vpop.permute.xlu0 %253
  %257 = vset.pattern.permute.xlu0 0
  %258 = vperm.xlu0 %257, %v60
  %v259 = vpop.permute.xlu0 %258
  %262 = vset.pattern.permute.xlu0 0
  %263 = vperm.xlu0 %262, %v61
  %v264 = vpop.permute.xlu0 %263
  %267 = vset.pattern.permute.xlu0 0
  %268 = vperm.xlu0 %267, %v62
  %v269 = vpop.permute.xlu0 %268
  %272 = vset.pattern.permute.xlu0 0
  %273 = vperm.xlu0 %272, %v63
  %v274 = vpop.permute.xlu0 %273
  %277 = vset.pattern.permute.xlu0 0
  %278 = vperm.xlu0 %277, %v64
  %v279 = vpop.permute.xlu0 %278
  %282 = vset.pattern.permute.xlu0 0
  %283 = vperm.xlu0 %282, %v65
  %v284 = vpop.permute.xlu0 %283
  %287 = vset.pattern.permute.xlu0 0
  %288 = vperm.xlu0 %287, %v66
  %v289 = vpop.permute.xlu0 %288
  %292 = vset.pattern.permute.xlu0 0
  %293 = vperm.xlu0 %292, %v67
  %v294 = vpop.permute.xlu0 %293
  %297 = vset.pattern.permute.xlu0 0
  %298 = vperm.xlu0 %297, %v68
  %v299 = vpop.permute.xlu0 %298
  %302 = vset.pattern.permute.xlu0 0
  %303 = vperm.xlu0 %302, %v69
  %v304 = vpop.permute.xlu0 %303
  %307 = vset.pattern.permute.xlu0 0
  %308 = vperm.xlu0 %307, %v70
  %v309 = vpop.permute.xlu0 %308
  %312 = vset.pattern.permute.xlu0 0
  %313 = vperm.xlu0 %312, %v71
  %v314 = vpop.permute.xlu0 %313
  %317 = vset.pattern.permute.xlu0 0
  %318 = vperm.xlu0 %317, %v72
  %v319 = vpop.permute.xlu0 %318
  %322 = vset.pattern.permute.xlu0 0
  %323 = vperm.xlu0 %322, %v73
  %v324 = vpop.permute.xlu0 %323
  %327 = vset.pattern.permute.xlu0 0
  %328 = vperm.xlu0 %327, %v74
  %v329 = vpop.permute.xlu0 %328
  %332 = vset.pattern.permute.xlu0 0
  %333 = vperm.xlu0 %332, %v75
  %v334 = vpop.permute.xlu0 %333
  %337 = vset.pattern.permute.xlu0 0
  %338 = vperm.xlu0 %337, %v76
  %v339 = vpop.permute.xlu0 %338
  %342 = vset.pattern.permute.xlu0 0
  %343 = vperm.xlu0 %342, %v77
  %v344 = vpop.permute.xlu0 %343
  %347 = vset.pattern.permute.xlu0 0
  %348 = vperm.xlu0 %347, %v78
  %v349 = vpop.permute.xlu0 %348
  %352 = vset.pattern.permute.xlu0 0
  %353 = vperm.xlu0 %352, %v79
  %v354 = vpop.permute.xlu0 %353
  %357 = vset.pattern.permute.xlu0 0
  %358 = vperm.xlu0 %357, %v80
  %v359 = vpop.permute.xlu0 %358
  %362 = vset.pattern.permute.xlu0 0
  %363 = vperm.xlu0 %362, %v81
  %v364 = vpop.permute.xlu0 %363
  %367 = vset.pattern.permute.xlu0 0
  %368 = vperm.xlu0 %367, %v82
  %v369 = vpop.permute.xlu0 %368
  %372 = vset.pattern.permute.xlu0 0
  %373 = vperm.xlu0 %372, %v83
  %v374 = vpop.permute.xlu0 %373
  %377 = vset.pattern.permute.xlu0 0
  %378 = vperm.xlu0 %377, %v84
  %v379 = vpop.permute.xlu0 %378
  %382 = vset.pattern.permute.xlu0 0
  %383 = vperm.xlu0 %382, %v85
  %v384 = vpop.permute.xlu0 %383
  %387 = vset.pattern.permute.xlu0 0
  %388 = vperm.xlu0 %387, %v86
  %v389 = vpop.permute.xlu0 %388
  %392 = vset.pattern.permute.xlu0 0
  %393 = vperm.xlu0 %392, %v87
  %v394 = vpop.permute.xlu0 %393
  %397 = vset.pattern.permute.xlu0 0
  %398 = vperm.xlu0 %397, %v88
  %v399 = vpop.permute.xlu0 %398
  %402 = vset.pattern.permute.xlu0 0
  %403 = vperm.xlu0 %402, %v89
  %v404 = vpop.permute.xlu0 %403
  %407 = vset.pattern.permute.xlu0 0
  %408 = vperm.xlu0 %407, %v90
  %v409 = vpop.permute.xlu0 %408
  %v411 = vperm.slane %v26, 0
  %v412 = vmul.f32 %v94, %v411
  %v413 = vmul.f32 %v99, %v411
  %v414 = vmul.f32 %v104, %v411
  %v415 = vmul.f32 %v109, %v411
  %v416 = vmul.f32 %v114, %v411
  %v417 = vmul.f32 %v119, %v411
  %v418 = vmul.f32 %v124, %v411
  %v419 = vmul.f32 %v129, %v411
  %v420 = vmul.f32 %v134, %v411
  %v421 = vmul.f32 %v139, %v411
  %v422 = vmul.f32 %v144, %v411
  %v423 = vmul.f32 %v149, %v411
  %v424 = vmul.f32 %v154, %v411
  %v425 = vmul.f32 %v159, %v411
  %v426 = vmul.f32 %v164, %v411
  %v427 = vmul.f32 %v169, %v411
  %v428 = vmul.f32 %v174, %v411
  %v429 = vmul.f32 %v179, %v411
  %v430 = vmul.f32 %v184, %v411
  %v431 = vmul.f32 %v189, %v411
  %v432 = vmul.f32 %v194, %v411
  %v433 = vmul.f32 %v199, %v411
  %v434 = vmul.f32 %v204, %v411
  %v435 = vmul.f32 %v209, %v411
  %v436 = vmul.f32 %v214, %v411
  %v437 = vmul.f32 %v219, %v411
  %v438 = vmul.f32 %v224, %v411
  %v439 = vmul.f32 %v229, %v411
  %v440 = vmul.f32 %v234, %v411
  %v441 = vmul.f32 %v239, %v411
  %v442 = vmul.f32 %v244, %v411
  %v443 = vmul.f32 %v249, %v411
  %v444 = vmul.f32 %v254, %v411
  %v445 = vmul.f32 %v259, %v411
  %v446 = vmul.f32 %v264, %v411
  %v447 = vmul.f32 %v269, %v411
  %v448 = vmul.f32 %v274, %v411
  %v449 = vmul.f32 %v279, %v411
  %v450 = vmul.f32 %v284, %v411
  %v451 = vmul.f32 %v289, %v411
  %v452 = vmul.f32 %v294, %v411
  %v453 = vmul.f32 %v299, %v411
  %v454 = vmul.f32 %v304, %v411
  %v455 = vmul.f32 %v309, %v411
  %v456 = vmul.f32 %v314, %v411
  %v457 = vmul.f32 %v319, %v411
  %v458 = vmul.f32 %v324, %v411
  %v459 = vmul.f32 %v329, %v411
  %v460 = vmul.f32 %v334, %v411
  %v461 = vmul.f32 %v339, %v411
  %v462 = vmul.f32 %v344, %v411
  %v463 = vmul.f32 %v349, %v411
  %v464 = vmul.f32 %v354, %v411
  %v465 = vmul.f32 %v359, %v411
  %v466 = vmul.f32 %v364, %v411
  %v467 = vmul.f32 %v369, %v411
  %v468 = vmul.f32 %v374, %v411
  %v469 = vmul.f32 %v379, %v411
  %v470 = vmul.f32 %v384, %v411
  %v471 = vmul.f32 %v389, %v411
  %v472 = vmul.f32 %v394, %v411
  %v473 = vmul.f32 %v399, %v411
  %v474 = vmul.f32 %v404, %v411
  %v475 = vmul.f32 %v409, %v411
  %476 = vset.pattern.permute.xlu0 1
  %477 = vperm.xlu0 %476, %v27
  %v478 = vpop.permute.xlu0 %477
  %480 = vset.pattern.permute.xlu0 1
  %481 = vperm.xlu0 %480, %v28
  %v482 = vpop.permute.xlu0 %481
  %484 = vset.pattern.permute.xlu0 1
  %485 = vperm.xlu0 %484, %v29
  %v486 = vpop.permute.xlu0 %485
  %488 = vset.pattern.permute.xlu0 1
  %489 = vperm.xlu0 %488, %v30
  %v490 = vpop.permute.xlu0 %489
  %492 = vset.pattern.permute.xlu0 1
  %493 = vperm.xlu0 %492, %v31
  %v494 = vpop.permute.xlu0 %493
  %496 = vset.pattern.permute.xlu0 1
  %497 = vperm.xlu0 %496, %v32
  %v498 = vpop.permute.xlu0 %497
  %500 = vset.pattern.permute.xlu0 1
  %501 = vperm.xlu0 %500, %v33
  %v502 = vpop.permute.xlu0 %501
  %504 = vset.pattern.permute.xlu0 1
  %505 = vperm.xlu0 %504, %v34
  %v506 = vpop.permute.xlu0 %505
  %508 = vset.pattern.permute.xlu0 1
  %509 = vperm.xlu0 %508, %v35
  %v510 = vpop.permute.xlu0 %509
  %512 = vset.pattern.permute.xlu0 1
  %513 = vperm.xlu0 %512, %v36
  %v514 = vpop.permute.xlu0 %513
  %516 = vset.pattern.permute.xlu0 1
  %517 = vperm.xlu0 %516, %v37
  %v518 = vpop.permute.xlu0 %517
  %520 = vset.pattern.permute.xlu0 1
  %521 = vperm.xlu0 %520, %v38
  %v522 = vpop.permute.xlu0 %521
  %524 = vset.pattern.permute.xlu0 1
  %525 = vperm.xlu0 %524, %v39
  %v526 = vpop.permute.xlu0 %525
  %528 = vset.pattern.permute.xlu0 1
  %529 = vperm.xlu0 %528, %v40
  %v530 = vpop.permute.xlu0 %529
  %532 = vset.pattern.permute.xlu0 1
  %533 = vperm.xlu0 %532, %v41
  %v534 = vpop.permute.xlu0 %533
  %536 = vset.pattern.permute.xlu0 1
  %537 = vperm.xlu0 %536, %v42
  %v538 = vpop.permute.xlu0 %537
  %540 = vset.pattern.permute.xlu0 1
  %541 = vperm.xlu0 %540, %v43
  %v542 = vpop.permute.xlu0 %541
  %544 = vset.pattern.permute.xlu0 1
  %545 = vperm.xlu0 %544, %v44
  %v546 = vpop.permute.xlu0 %545
  %548 = vset.pattern.permute.xlu0 1
  %549 = vperm.xlu0 %548, %v45
  %v550 = vpop.permute.xlu0 %549
  %552 = vset.pattern.permute.xlu0 1
  %553 = vperm.xlu0 %552, %v46
  %v554 = vpop.permute.xlu0 %553
  %556 = vset.pattern.permute.xlu0 1
  %557 = vperm.xlu0 %556, %v47
  %v558 = vpop.permute.xlu0 %557
  %560 = vset.pattern.permute.xlu0 1
  %561 = vperm.xlu0 %560, %v48
  %v562 = vpop.permute.xlu0 %561
  %564 = vset.pattern.permute.xlu0 1
  %565 = vperm.xlu0 %564, %v49
  %v566 = vpop.permute.xlu0 %565
  %568 = vset.pattern.permute.xlu0 1
  %569 = vperm.xlu0 %568, %v50
  %v570 = vpop.permute.xlu0 %569
  %572 = vset.pattern.permute.xlu0 1
  %573 = vperm.xlu0 %572, %v51
  %v574 = vpop.permute.xlu0 %573
  %576 = vset.pattern.permute.xlu0 1
  %577 = vperm.xlu0 %576, %v52
  %v578 = vpop.permute.xlu0 %577
  %580 = vset.pattern.permute.xlu0 1
  %581 = vperm.xlu0 %580, %v53
  %v582 = vpop.permute.xlu0 %581
  %584 = vset.pattern.permute.xlu0 1
  %585 = vperm.xlu0 %584, %v54
  %v586 = vpop.permute.xlu0 %585
  %588 = vset.pattern.permute.xlu0 1
  %589 = vperm.xlu0 %588, %v55
  %v590 = vpop.permute.xlu0 %589
  %592 = vset.pattern.permute.xlu0 1
  %593 = vperm.xlu0 %592, %v56
  %v594 = vpop.permute.xlu0 %593
  %596 = vset.pattern.permute.xlu0 1
  %597 = vperm.xlu0 %596, %v57
  %v598 = vpop.permute.xlu0 %597
  %600 = vset.pattern.permute.xlu0 1
  %601 = vperm.xlu0 %600, %v58
  %v602 = vpop.permute.xlu0 %601
  %604 = vset.pattern.permute.xlu0 1
  %605 = vperm.xlu0 %604, %v59
  %v606 = vpop.permute.xlu0 %605
  %608 = vset.pattern.permute.xlu0 1
  %609 = vperm.xlu0 %608, %v60
  %v610 = vpop.permute.xlu0 %609
  %612 = vset.pattern.permute.xlu0 1
  %613 = vperm.xlu0 %612, %v61
  %v614 = vpop.permute.xlu0 %613
  %616 = vset.pattern.permute.xlu0 1
  %617 = vperm.xlu0 %616, %v62
  %v618 = vpop.permute.xlu0 %617
  %620 = vset.pattern.permute.xlu0 1
  %621 = vperm.xlu0 %620, %v63
  %v622 = vpop.permute.xlu0 %621
  %624 = vset.pattern.permute.xlu0 1
  %625 = vperm.xlu0 %624, %v64
  %v626 = vpop.permute.xlu0 %625
  %628 = vset.pattern.permute.xlu0 1
  %629 = vperm.xlu0 %628, %v65
  %v630 = vpop.permute.xlu0 %629
  %632 = vset.pattern.permute.xlu0 1
  %633 = vperm.xlu0 %632, %v66
  %v634 = vpop.permute.xlu0 %633
  %636 = vset.pattern.permute.xlu0 1
  %637 = vperm.xlu0 %636, %v67
  %v638 = vpop.permute.xlu0 %637
  %640 = vset.pattern.permute.xlu0 1
  %641 = vperm.xlu0 %640, %v68
  %v642 = vpop.permute.xlu0 %641
  %644 = vset.pattern.permute.xlu0 1
  %645 = vperm.xlu0 %644, %v69
  %v646 = vpop.permute.xlu0 %645
  %648 = vset.pattern.permute.xlu0 1
  %649 = vperm.xlu0 %648, %v70
  %v650 = vpop.permute.xlu0 %649
  %652 = vset.pattern.permute.xlu0 1
  %653 = vperm.xlu0 %652, %v71
  %v654 = vpop.permute.xlu0 %653
  %656 = vset.pattern.permute.xlu0 1
  %657 = vperm.xlu0 %656, %v72
  %v658 = vpop.permute.xlu0 %657
  %660 = vset.pattern.permute.xlu0 1
  %661 = vperm.xlu0 %660, %v73
  %v662 = vpop.permute.xlu0 %661
  %664 = vset.pattern.permute.xlu0 1
  %665 = vperm.xlu0 %664, %v74
  %v666 = vpop.permute.xlu0 %665
  %668 = vset.pattern.permute.xlu0 1
  %669 = vperm.xlu0 %668, %v75
  %v670 = vpop.permute.xlu0 %669
  %672 = vset.pattern.permute.xlu0 1
  %673 = vperm.xlu0 %672, %v76
  %v674 = vpop.permute.xlu0 %673
  %676 = vset.pattern.permute.xlu0 1
  %677 = vperm.xlu0 %676, %v77
  %v678 = vpop.permute.xlu0 %677
  %680 = vset.pattern.permute.xlu0 1
  %681 = vperm.xlu0 %680, %v78
  %v682 = vpop.permute.xlu0 %681
  %684 = vset.pattern.permute.xlu0 1
  %685 = vperm.xlu0 %684, %v79
  %v686 = vpop.permute.xlu0 %685
  %688 = vset.pattern.permute.xlu0 1
  %689 = vperm.xlu0 %688, %v80
  %v690 = vpop.permute.xlu0 %689
  %692 = vset.pattern.permute.xlu0 1
  %693 = vperm.xlu0 %692, %v81
  %v694 = vpop.permute.xlu0 %693
  %696 = vset.pattern.permute.xlu0 1
  %697 = vperm.xlu0 %696, %v82
  %v698 = vpop.permute.xlu0 %697
  %700 = vset.pattern.permute.xlu0 1
  %701 = vperm.xlu0 %700, %v83
  %v702 = vpop.permute.xlu0 %701
  %704 = vset.pattern.permute.xlu0 1
  %705 = vperm.xlu0 %704, %v84
  %v706 = vpop.permute.xlu0 %705
  %708 = vset.pattern.permute.xlu0 1
  %709 = vperm.xlu0 %708, %v85
  %v710 = vpop.permute.xlu0 %709
  %712 = vset.pattern.permute.xlu0 1
  %713 = vperm.xlu0 %712, %v86
  %v714 = vpop.permute.xlu0 %713
  %716 = vset.pattern.permute.xlu0 1
  %717 = vperm.xlu0 %716, %v87
  %v718 = vpop.permute.xlu0 %717
  %720 = vset.pattern.permute.xlu0 1
  %721 = vperm.xlu0 %720, %v88
  %v722 = vpop.permute.xlu0 %721
  %724 = vset.pattern.permute.xlu0 1
  %725 = vperm.xlu0 %724, %v89
  %v726 = vpop.permute.xlu0 %725
  %728 = vset.pattern.permute.xlu0 1
  %729 = vperm.xlu0 %728, %v90
  %v730 = vpop.permute.xlu0 %729
  %v732 = vperm.slane %v26, 1
  %v733 = vmul.f32 %v478, %v732
  %v734 = vmul.f32 %v482, %v732
  %v735 = vmul.f32 %v486, %v732
  %v736 = vmul.f32 %v490, %v732
  %v737 = vmul.f32 %v494, %v732
  %v738 = vmul.f32 %v498, %v732
  %v739 = vmul.f32 %v502, %v732
  %v740 = vmul.f32 %v506, %v732
  %v741 = vmul.f32 %v510, %v732
  %v742 = vmul.f32 %v514, %v732
  %v743 = vmul.f32 %v518, %v732
  %v744 = vmul.f32 %v522, %v732
  %v745 = vmul.f32 %v526, %v732
  %v746 = vmul.f32 %v530, %v732
  %v747 = vmul.f32 %v534, %v732
  %v748 = vmul.f32 %v538, %v732
  %v749 = vmul.f32 %v542, %v732
  %v750 = vmul.f32 %v546, %v732
  %v751 = vmul.f32 %v550, %v732
  %v752 = vmul.f32 %v554, %v732
  %v753 = vmul.f32 %v558, %v732
  %v754 = vmul.f32 %v562, %v732
  %v755 = vmul.f32 %v566, %v732
  %v756 = vmul.f32 %v570, %v732
  %v757 = vmul.f32 %v574, %v732
  %v758 = vmul.f32 %v578, %v732
  %v759 = vmul.f32 %v582, %v732
  %v760 = vmul.f32 %v586, %v732
  %v761 = vmul.f32 %v590, %v732
  %v762 = vmul.f32 %v594, %v732
  %v763 = vmul.f32 %v598, %v732
  %v764 = vmul.f32 %v602, %v732
  %v765 = vmul.f32 %v606, %v732
  %v766 = vmul.f32 %v610, %v732
  %v767 = vmul.f32 %v614, %v732
  %v768 = vmul.f32 %v618, %v732
  %v769 = vmul.f32 %v622, %v732
  %v770 = vmul.f32 %v626, %v732
  %v771 = vmul.f32 %v630, %v732
  %v772 = vmul.f32 %v634, %v732
  %v773 = vmul.f32 %v638, %v732
  %v774 = vmul.f32 %v642, %v732
  %v775 = vmul.f32 %v646, %v732
  %v776 = vmul.f32 %v650, %v732
  %v777 = vmul.f32 %v654, %v732
  %v778 = vmul.f32 %v658, %v732
  %v779 = vmul.f32 %v662, %v732
  %v780 = vmul.f32 %v666, %v732
  %v781 = vmul.f32 %v670, %v732
  %v782 = vmul.f32 %v674, %v732
  %v783 = vmul.f32 %v678, %v732
  %v784 = vmul.f32 %v682, %v732
  %v785 = vmul.f32 %v686, %v732
  %v786 = vmul.f32 %v690, %v732
  %v787 = vmul.f32 %v694, %v732
  %v788 = vmul.f32 %v698, %v732
  %v789 = vmul.f32 %v702, %v732
  %v790 = vmul.f32 %v706, %v732
  %v791 = vmul.f32 %v710, %v732
  %v792 = vmul.f32 %v714, %v732
  %v793 = vmul.f32 %v718, %v732
  %v794 = vmul.f32 %v722, %v732
  %v795 = vmul.f32 %v726, %v732
  %v796 = vmul.f32 %v730, %v732
  %v797 = vadd.f32 %v412, %v733
  %v798 = vadd.f32 %v413, %v734
  %v799 = vadd.f32 %v414, %v735
  %v800 = vadd.f32 %v415, %v736
  %v801 = vadd.f32 %v416, %v737
  %v802 = vadd.f32 %v417, %v738
  %v803 = vadd.f32 %v418, %v739
  %v804 = vadd.f32 %v419, %v740
  %v805 = vadd.f32 %v420, %v741
  %v806 = vadd.f32 %v421, %v742
  %v807 = vadd.f32 %v422, %v743
  %v808 = vadd.f32 %v423, %v744
  %v809 = vadd.f32 %v424, %v745
  %v810 = vadd.f32 %v425, %v746
  %v811 = vadd.f32 %v426, %v747
  %v812 = vadd.f32 %v427, %v748
  %v813 = vadd.f32 %v428, %v749
  %v814 = vadd.f32 %v429, %v750
  %v815 = vadd.f32 %v430, %v751
  %v816 = vadd.f32 %v431, %v752
  %v817 = vadd.f32 %v432, %v753
  %v818 = vadd.f32 %v433, %v754
  %v819 = vadd.f32 %v434, %v755
  %v820 = vadd.f32 %v435, %v756
  %v821 = vadd.f32 %v436, %v757
  %v822 = vadd.f32 %v437, %v758
  %v823 = vadd.f32 %v438, %v759
  %v824 = vadd.f32 %v439, %v760
  %v825 = vadd.f32 %v440, %v761
  %v826 = vadd.f32 %v441, %v762
  %v827 = vadd.f32 %v442, %v763
  %v828 = vadd.f32 %v443, %v764
  %v829 = vadd.f32 %v444, %v765
  %v830 = vadd.f32 %v445, %v766
  %v831 = vadd.f32 %v446, %v767
  %v832 = vadd.f32 %v447, %v768
  %v833 = vadd.f32 %v448, %v769
  %v834 = vadd.f32 %v449, %v770
  %v835 = vadd.f32 %v450, %v771
  %v836 = vadd.f32 %v451, %v772
  %v837 = vadd.f32 %v452, %v773
  %v838 = vadd.f32 %v453, %v774
  %v839 = vadd.f32 %v454, %v775
  %v840 = vadd.f32 %v455, %v776
  %v841 = vadd.f32 %v456, %v777
  %v842 = vadd.f32 %v457, %v778
  %v843 = vadd.f32 %v458, %v779
  %v844 = vadd.f32 %v459, %v780
  %v845 = vadd.f32 %v460, %v781
  %v846 = vadd.f32 %v461, %v782
  %v847 = vadd.f32 %v462, %v783
  %v848 = vadd.f32 %v463, %v784
  %v849 = vadd.f32 %v464, %v785
  %v850 = vadd.f32 %v465, %v786
  %v851 = vadd.f32 %v466, %v787
  %v852 = vadd.f32 %v467, %v788
  %v853 = vadd.f32 %v468, %v789
  %v854 = vadd.f32 %v469, %v790
  %v855 = vadd.f32 %v470, %v791
  %v856 = vadd.f32 %v471, %v792
  %v857 = vadd.f32 %v472, %v793
  %v858 = vadd.f32 %v473, %v794
  %v859 = vadd.f32 %v474, %v795
  %v860 = vadd.f32 %v475, %v796
  %v861 = vld [vmem:[%s2] sm:$0xff]
  %v862 = vld [vmem:[%s2 + $0x8] sm:$0xff]
  %v863 = vld [vmem:[%s2 + $0x10] sm:$0xff]
  %v864 = vld [vmem:[%s2 + $0x18] sm:$0xff]
  %v865 = vld [vmem:[%s2 + $0x20] sm:$0xff]
  %v866 = vld [vmem:[%s2 + $0x28] sm:$0xff]
  %v867 = vld [vmem:[%s2 + $0x30] sm:$0xff]
  %v868 = vld [vmem:[%s2 + $0x38] sm:$0xff]
  %v869 = vld [vmem:[%s2 + $0x40] sm:$0xff]
  %v870 = vld [vmem:[%s2 + $0x48] sm:$0xff]
  %v871 = vld [vmem:[%s2 + $0x50] sm:$0xff]
  %v872 = vld [vmem:[%s2 + $0x58] sm:$0xff]
  %v873 = vld [vmem:[%s2 + $0x60] sm:$0xff]
  %v874 = vld [vmem:[%s2 + $0x68] sm:$0xff]
  %v875 = vld [vmem:[%s2 + $0x70] sm:$0xff]
  %v876 = vld [vmem:[%s2 + $0x78] sm:$0xff]
  %v877 = vld [vmem:[%s2 + $0x80] sm:$0xff]
  %v878 = vld [vmem:[%s2 + $0x88] sm:$0xff]
  %v879 = vld [vmem:[%s2 + $0x90] sm:$0xff]
  %v880 = vld [vmem:[%s2 + $0x98] sm:$0xff]
  %v881 = vld [vmem:[%s2 + $0xa0] sm:$0xff]
  %v882 = vld [vmem:[%s2 + $0xa8] sm:$0xff]
  %v883 = vld [vmem:[%s2 + $0xb0] sm:$0xff]
  %v884 = vld [vmem:[%s2 + $0xb8] sm:$0xff]
  %v885 = vld [vmem:[%s2 + $0xc0] sm:$0xff]
  %v886 = vld [vmem:[%s2 + $0xc8] sm:$0xff]
  %v887 = vld [vmem:[%s2 + $0xd0] sm:$0xff]
  %v888 = vld [vmem:[%s2 + $0xd8] sm:$0xff]
  %v889 = vld [vmem:[%s2 + $0xe0] sm:$0xff]
  %v890 = vld [vmem:[%s2 + $0xe8] sm:$0xff]
  %v891 = vld [vmem:[%s2 + $0xf0] sm:$0xff]
  %v892 = vld [vmem:[%s2 + $0xf8] sm:$0xff]
  %v893 = vld [vmem:[%s2 + $0x100] sm:$0xff]
  %v894 = vld [vmem:[%s2 + $0x108] sm:$0xff]
  %v895 = vld [vmem:[%s2 + $0x110] sm:$0xff]
  %v896 = vld [vmem:[%s2 + $0x118] sm:$0xff]
  %v897 = vld [vmem:[%s2 + $0x120] sm:$0xff]
  %v898 = vld [vmem:[%s2 + $0x128] sm:$0xff]
  %v899 = vld [vmem:[%s2 + $0x130] sm:$0xff]
  %v900 = vld [vmem:[%s2 + $0x138] sm:$0xff]
  %v901 = vld [vmem:[%s2 + $0x140] sm:$0xff]
  %v902 = vld [vmem:[%s2 + $0x148] sm:$0xff]
  %v903 = vld [vmem:[%s2 + $0x150] sm:$0xff]
  %v904 = vld [vmem:[%s2 + $0x158] sm:$0xff]
  %v905 = vld [vmem:[%s2 + $0x160] sm:$0xff]
  %v906 = vld [vmem:[%s2 + $0x168] sm:$0xff]
  %v907 = vld [vmem:[%s2 + $0x170] sm:$0xff]
  %v908 = vld [vmem:[%s2 + $0x178] sm:$0xff]
  %v909 = vld [vmem:[%s2 + $0x180] sm:$0xff]
  %v910 = vld [vmem:[%s2 + $0x188] sm:$0xff]
  %v911 = vld [vmem:[%s2 + $0x190] sm:$0xff]
  %v912 = vld [vmem:[%s2 + $0x198] sm:$0xff]
  %v913 = vld [vmem:[%s2 + $0x1a0] sm:$0xff]
  %v914 = vld [vmem:[%s2 + $0x1a8] sm:$0xff]
  %v915 = vld [vmem:[%s2 + $0x1b0] sm:$0xff]
  %v916 = vld [vmem:[%s2 + $0x1b8] sm:$0xff]
  %v917 = vld [vmem:[%s2 + $0x1c0] sm:$0xff]
  %v918 = vld [vmem:[%s2 + $0x1c8] sm:$0xff]
  %v919 = vld [vmem:[%s2 + $0x1d0] sm:$0xff]
  %v920 = vld [vmem:[%s2 + $0x1d8] sm:$0xff]
  %v921 = vld [vmem:[%s2 + $0x1e0] sm:$0xff]
  %v922 = vld [vmem:[%s2 + $0x1e8] sm:$0xff]
  %v923 = vld [vmem:[%s2 + $0x1f0] sm:$0xff]
  %v924 = vld [vmem:[%s2 + $0x1f8] sm:$0xff]
  %926 = vset.pattern.permute.xlu0 0
  %927 = vperm.xlu0 %926, %v861
  %v928 = vpop.permute.xlu0 %927
  %931 = vset.pattern.permute.xlu0 0
  %932 = vperm.xlu0 %931, %v862
  %v933 = vpop.permute.xlu0 %932
  %936 = vset.pattern.permute.xlu0 0
  %937 = vperm.xlu0 %936, %v863
  %v938 = vpop.permute.xlu0 %937
  %941 = vset.pattern.permute.xlu0 0
  %942 = vperm.xlu0 %941, %v864
  %v943 = vpop.permute.xlu0 %942
  %946 = vset.pattern.permute.xlu0 0
  %947 = vperm.xlu0 %946, %v865
  %v948 = vpop.permute.xlu0 %947
  %951 = vset.pattern.permute.xlu0 0
  %952 = vperm.xlu0 %951, %v866
  %v953 = vpop.permute.xlu0 %952
  %956 = vset.pattern.permute.xlu0 0
  %957 = vperm.xlu0 %956, %v867
  %v958 = vpop.permute.xlu0 %957
  %961 = vset.pattern.permute.xlu0 0
  %962 = vperm.xlu0 %961, %v868
  %v963 = vpop.permute.xlu0 %962
  %966 = vset.pattern.permute.xlu0 0
  %967 = vperm.xlu0 %966, %v869
  %v968 = vpop.permute.xlu0 %967
  %971 = vset.pattern.permute.xlu0 0
  %972 = vperm.xlu0 %971, %v870
  %v973 = vpop.permute.xlu0 %972
  %976 = vset.pattern.permute.xlu0 0
  %977 = vperm.xlu0 %976, %v871
  %v978 = vpop.permute.xlu0 %977
  %981 = vset.pattern.permute.xlu0 0
  %982 = vperm.xlu0 %981, %v872
  %v983 = vpop.permute.xlu0 %982
  %986 = vset.pattern.permute.xlu0 0
  %987 = vperm.xlu0 %986, %v873
  %v988 = vpop.permute.xlu0 %987
  %991 = vset.pattern.permute.xlu0 0
  %992 = vperm.xlu0 %991, %v874
  %v993 = vpop.permute.xlu0 %992
  %996 = vset.pattern.permute.xlu0 0
  %997 = vperm.xlu0 %996, %v875
  %v998 = vpop.permute.xlu0 %997
  %1001 = vset.pattern.permute.xlu0 0
  %1002 = vperm.xlu0 %1001, %v876
  %v1003 = vpop.permute.xlu0 %1002
  %1006 = vset.pattern.permute.xlu0 0
  %1007 = vperm.xlu0 %1006, %v877
  %v1008 = vpop.permute.xlu0 %1007
  %1011 = vset.pattern.permute.xlu0 0
  %1012 = vperm.xlu0 %1011, %v878
  %v1013 = vpop.permute.xlu0 %1012
  %1016 = vset.pattern.permute.xlu0 0
  %1017 = vperm.xlu0 %1016, %v879
  %v1018 = vpop.permute.xlu0 %1017
  %1021 = vset.pattern.permute.xlu0 0
  %1022 = vperm.xlu0 %1021, %v880
  %v1023 = vpop.permute.xlu0 %1022
  %1026 = vset.pattern.permute.xlu0 0
  %1027 = vperm.xlu0 %1026, %v881
  %v1028 = vpop.permute.xlu0 %1027
  %1031 = vset.pattern.permute.xlu0 0
  %1032 = vperm.xlu0 %1031, %v882
  %v1033 = vpop.permute.xlu0 %1032
  %1036 = vset.pattern.permute.xlu0 0
  %1037 = vperm.xlu0 %1036, %v883
  %v1038 = vpop.permute.xlu0 %1037
  %1041 = vset.pattern.permute.xlu0 0
  %1042 = vperm.xlu0 %1041, %v884
  %v1043 = vpop.permute.xlu0 %1042
  %1046 = vset.pattern.permute.xlu0 0
  %1047 = vperm.xlu0 %1046, %v885
  %v1048 = vpop.permute.xlu0 %1047
  %1051 = vset.pattern.permute.xlu0 0
  %1052 = vperm.xlu0 %1051, %v886
  %v1053 = vpop.permute.xlu0 %1052
  %1056 = vset.pattern.permute.xlu0 0
  %1057 = vperm.xlu0 %1056, %v887
  %v1058 = vpop.permute.xlu0 %1057
  %1061 = vset.pattern.permute.xlu0 0
  %1062 = vperm.xlu0 %1061, %v888
  %v1063 = vpop.permute.xlu0 %1062
  %1066 = vset.pattern.permute.xlu0 0
  %1067 = vperm.xlu0 %1066, %v889
  %v1068 = vpop.permute.xlu0 %1067
  %1071 = vset.pattern.permute.xlu0 0
  %1072 = vperm.xlu0 %1071, %v890
  %v1073 = vpop.permute.xlu0 %1072
  %1076 = vset.pattern.permute.xlu0 0
  %1077 = vperm.xlu0 %1076, %v891
  %v1078 = vpop.permute.xlu0 %1077
  %1081 = vset.pattern.permute.xlu0 0
  %1082 = vperm.xlu0 %1081, %v892
  %v1083 = vpop.permute.xlu0 %1082
  %1086 = vset.pattern.permute.xlu0 0
  %1087 = vperm.xlu0 %1086, %v893
  %v1088 = vpop.permute.xlu0 %1087
  %1091 = vset.pattern.permute.xlu0 0
  %1092 = vperm.xlu0 %1091, %v894
  %v1093 = vpop.permute.xlu0 %1092
  %1096 = vset.pattern.permute.xlu0 0
  %1097 = vperm.xlu0 %1096, %v895
  %v1098 = vpop.permute.xlu0 %1097
  %1101 = vset.pattern.permute.xlu0 0
  %1102 = vperm.xlu0 %1101, %v896
  %v1103 = vpop.permute.xlu0 %1102
  %1106 = vset.pattern.permute.xlu0 0
  %1107 = vperm.xlu0 %1106, %v897
  %v1108 = vpop.permute.xlu0 %1107
  %1111 = vset.pattern.permute.xlu0 0
  %1112 = vperm.xlu0 %1111, %v898
  %v1113 = vpop.permute.xlu0 %1112
  %1116 = vset.pattern.permute.xlu0 0
  %1117 = vperm.xlu0 %1116, %v899
  %v1118 = vpop.permute.xlu0 %1117
  %1121 = vset.pattern.permute.xlu0 0
  %1122 = vperm.xlu0 %1121, %v900
  %v1123 = vpop.permute.xlu0 %1122
  %1126 = vset.pattern.permute.xlu0 0
  %1127 = vperm.xlu0 %1126, %v901
  %v1128 = vpop.permute.xlu0 %1127
  %1131 = vset.pattern.permute.xlu0 0
  %1132 = vperm.xlu0 %1131, %v902
  %v1133 = vpop.permute.xlu0 %1132
  %1136 = vset.pattern.permute.xlu0 0
  %1137 = vperm.xlu0 %1136, %v903
  %v1138 = vpop.permute.xlu0 %1137
  %1141 = vset.pattern.permute.xlu0 0
  %1142 = vperm.xlu0 %1141, %v904
  %v1143 = vpop.permute.xlu0 %1142
  %1146 = vset.pattern.permute.xlu0 0
  %1147 = vperm.xlu0 %1146, %v905
  %v1148 = vpop.permute.xlu0 %1147
  %1151 = vset.pattern.permute.xlu0 0
  %1152 = vperm.xlu0 %1151, %v906
  %v1153 = vpop.permute.xlu0 %1152
  %1156 = vset.pattern.permute.xlu0 0
  %1157 = vperm.xlu0 %1156, %v907
  %v1158 = vpop.permute.xlu0 %1157
  %1161 = vset.pattern.permute.xlu0 0
  %1162 = vperm.xlu0 %1161, %v908
  %v1163 = vpop.permute.xlu0 %1162
  %1166 = vset.pattern.permute.xlu0 0
  %1167 = vperm.xlu0 %1166, %v909
  %v1168 = vpop.permute.xlu0 %1167
  %1171 = vset.pattern.permute.xlu0 0
  %1172 = vperm.xlu0 %1171, %v910
  %v1173 = vpop.permute.xlu0 %1172
  %1176 = vset.pattern.permute.xlu0 0
  %1177 = vperm.xlu0 %1176, %v911
  %v1178 = vpop.permute.xlu0 %1177
  %1181 = vset.pattern.permute.xlu0 0
  %1182 = vperm.xlu0 %1181, %v912
  %v1183 = vpop.permute.xlu0 %1182
  %1186 = vset.pattern.permute.xlu0 0
  %1187 = vperm.xlu0 %1186, %v913
  %v1188 = vpop.permute.xlu0 %1187
  %1191 = vset.pattern.permute.xlu0 0
  %1192 = vperm.xlu0 %1191, %v914
  %v1193 = vpop.permute.xlu0 %1192
  %1196 = vset.pattern.permute.xlu0 0
  %1197 = vperm.xlu0 %1196, %v915
  %v1198 = vpop.permute.xlu0 %1197
  %1201 = vset.pattern.permute.xlu0 0
  %1202 = vperm.xlu0 %1201, %v916
  %v1203 = vpop.permute.xlu0 %1202
  %1206 = vset.pattern.permute.xlu0 0
  %1207 = vperm.xlu0 %1206, %v917
  %v1208 = vpop.permute.xlu0 %1207
  %1211 = vset.pattern.permute.xlu0 0
  %1212 = vperm.xlu0 %1211, %v918
  %v1213 = vpop.permute.xlu0 %1212
  %1216 = vset.pattern.permute.xlu0 0
  %1217 = vperm.xlu0 %1216, %v919
  %v1218 = vpop.permute.xlu0 %1217
  %1221 = vset.pattern.permute.xlu0 0
  %1222 = vperm.xlu0 %1221, %v920
  %v1223 = vpop.permute.xlu0 %1222
  %1226 = vset.pattern.permute.xlu0 0
  %1227 = vperm.xlu0 %1226, %v921
  %v1228 = vpop.permute.xlu0 %1227
  %1231 = vset.pattern.permute.xlu0 0
  %1232 = vperm.xlu0 %1231, %v922
  %v1233 = vpop.permute.xlu0 %1232
  %1236 = vset.pattern.permute.xlu0 0
  %1237 = vperm.xlu0 %1236, %v923
  %v1238 = vpop.permute.xlu0 %1237
  %1241 = vset.pattern.permute.xlu0 0
  %1242 = vperm.xlu0 %1241, %v924
  %v1243 = vpop.permute.xlu0 %1242
  %v1245 = vadd.f32 %v797, %v928
  %v1246 = vadd.f32 %v798, %v933
  %v1247 = vadd.f32 %v799, %v938
  %v1248 = vadd.f32 %v800, %v943
  %v1249 = vadd.f32 %v801, %v948
  %v1250 = vadd.f32 %v802, %v953
  %v1251 = vadd.f32 %v803, %v958
  %v1252 = vadd.f32 %v804, %v963
  %v1253 = vadd.f32 %v805, %v968
  %v1254 = vadd.f32 %v806, %v973
  %v1255 = vadd.f32 %v807, %v978
  %v1256 = vadd.f32 %v808, %v983
  %v1257 = vadd.f32 %v809, %v988
  %v1258 = vadd.f32 %v810, %v993
  %v1259 = vadd.f32 %v811, %v998
  %v1260 = vadd.f32 %v812, %v1003
  %v1261 = vadd.f32 %v813, %v1008
  %v1262 = vadd.f32 %v814, %v1013
  %v1263 = vadd.f32 %v815, %v1018
  %v1264 = vadd.f32 %v816, %v1023
  %v1265 = vadd.f32 %v817, %v1028
  %v1266 = vadd.f32 %v818, %v1033
  %v1267 = vadd.f32 %v819, %v1038
  %v1268 = vadd.f32 %v820, %v1043
  %v1269 = vadd.f32 %v821, %v1048
  %v1270 = vadd.f32 %v822, %v1053
  %v1271 = vadd.f32 %v823, %v1058
  %v1272 = vadd.f32 %v824, %v1063
  %v1273 = vadd.f32 %v825, %v1068
  %v1274 = vadd.f32 %v826, %v1073
  %v1275 = vadd.f32 %v827, %v1078
  %v1276 = vadd.f32 %v828, %v1083
  %v1277 = vadd.f32 %v829, %v1088
  %v1278 = vadd.f32 %v830, %v1093
  %v1279 = vadd.f32 %v831, %v1098
  %v1280 = vadd.f32 %v832, %v1103
  %v1281 = vadd.f32 %v833, %v1108
  %v1282 = vadd.f32 %v834, %v1113
  %v1283 = vadd.f32 %v835, %v1118
  %v1284 = vadd.f32 %v836, %v1123
  %v1285 = vadd.f32 %v837, %v1128
  %v1286 = vadd.f32 %v838, %v1133
  %v1287 = vadd.f32 %v839, %v1138
  %v1288 = vadd.f32 %v840, %v1143
  %v1289 = vadd.f32 %v841, %v1148
  %v1290 = vadd.f32 %v842, %v1153
  %v1291 = vadd.f32 %v843, %v1158
  %v1292 = vadd.f32 %v844, %v1163
  %v1293 = vadd.f32 %v845, %v1168
  %v1294 = vadd.f32 %v846, %v1173
  %v1295 = vadd.f32 %v847, %v1178
  %v1296 = vadd.f32 %v848, %v1183
  %v1297 = vadd.f32 %v849, %v1188
  %v1298 = vadd.f32 %v850, %v1193
  %v1299 = vadd.f32 %v851, %v1198
  %v1300 = vadd.f32 %v852, %v1203
  %v1301 = vadd.f32 %v853, %v1208
  %v1302 = vadd.f32 %v854, %v1213
  %v1303 = vadd.f32 %v855, %v1218
  %v1304 = vadd.f32 %v856, %v1223
  %v1305 = vadd.f32 %v857, %v1228
  %v1306 = vadd.f32 %v858, %v1233
  %v1307 = vadd.f32 %v859, %v1238
  %v1308 = vadd.f32 %v860, %v1243
  %v1309 = vmax.f32 %v1245, 0.0
  %v1310 = vmax.f32 %v1246, 0.0
  %v1311 = vmax.f32 %v1247, 0.0
  %v1312 = vmax.f32 %v1248, 0.0
  %v1313 = vmax.f32 %v1249, 0.0
  %v1314 = vmax.f32 %v1250, 0.0
  %v1315 = vmax.f32 %v1251, 0.0
  %v1316 = vmax.f32 %v1252, 0.0
  %v1317 = vmax.f32 %v1253, 0.0
  %v1318 = vmax.f32 %v1254, 0.0
  %v1319 = vmax.f32 %v1255, 0.0
  %v1320 = vmax.f32 %v1256, 0.0
  %v1321 = vmax.f32 %v1257, 0.0
  %v1322 = vmax.f32 %v1258, 0.0
  %v1323 = vmax.f32 %v1259, 0.0
  %v1324 = vmax.f32 %v1260, 0.0
  %v1325 = vmax.f32 %v1261, 0.0
  %v1326 = vmax.f32 %v1262, 0.0
  %v1327 = vmax.f32 %v1263, 0.0
  %v1328 = vmax.f32 %v1264, 0.0
  %v1329 = vmax.f32 %v1265, 0.0
  %v1330 = vmax.f32 %v1266, 0.0
  %v1331 = vmax.f32 %v1267, 0.0
  %v1332 = vmax.f32 %v1268, 0.0
  %v1333 = vmax.f32 %v1269, 0.0
  %v1334 = vmax.f32 %v1270, 0.0
  %v1335 = vmax.f32 %v1271, 0.0
  %v1336 = vmax.f32 %v1272, 0.0
  %v1337 = vmax.f32 %v1273, 0.0
  %v1338 = vmax.f32 %v1274, 0.0
  %v1339 = vmax.f32 %v1275, 0.0
  %v1340 = vmax.f32 %v1276, 0.0
  %v1341 = vmax.f32 %v1277, 0.0
  %v1342 = vmax.f32 %v1278, 0.0
  %v1343 = vmax.f32 %v1279, 0.0
  %v1344 = vmax.f32 %v1280, 0.0
  %v1345 = vmax.f32 %v1281, 0.0
  %v1346 = vmax.f32 %v1282, 0.0
  %v1347 = vmax.f32 %v1283, 0.0
  %v1348 = vmax.f32 %v1284, 0.0
  %v1349 = vmax.f32 %v1285, 0.0
  %v1350 = vmax.f32 %v1286, 0.0
  %v1351 = vmax.f32 %v1287, 0.0
  %v1352 = vmax.f32 %v1288, 0.0
  %v1353 = vmax.f32 %v1289, 0.0
  %v1354 = vmax.f32 %v1290, 0.0
  %v1355 = vmax.f32 %v1291, 0.0
  %v1356 = vmax.f32 %v1292, 0.0
  %v1357 = vmax.f32 %v1293, 0.0
  %v1358 = vmax.f32 %v1294, 0.0
  %v1359 = vmax.f32 %v1295, 0.0
  %v1360 = vmax.f32 %v1296, 0.0
  %v1361 = vmax.f32 %v1297, 0.0
  %v1362 = vmax.f32 %v1298, 0.0
  %v1363 = vmax.f32 %v1299, 0.0
  %v1364 = vmax.f32 %v1300, 0.0
  %v1365 = vmax.f32 %v1301, 0.0
  %v1366 = vmax.f32 %v1302, 0.0
  %v1367 = vmax.f32 %v1303, 0.0
  %v1368 = vmax.f32 %v1304, 0.0
  %v1369 = vmax.f32 %v1305, 0.0
  %v1370 = vmax.f32 %v1306, 0.0
  %v1371 = vmax.f32 %v1307, 0.0
  %v1372 = vmax.f32 %v1308, 0.0
  %v1373 = vld [vmem:[%s3] sm:$0xff]
  %v1374 = vld [vmem:[%s3 + $0x8] sm:$0xff]
  %v1375 = vld [vmem:[%s3 + $0x10] sm:$0xff]
  %v1376 = vld [vmem:[%s3 + $0x18] sm:$0xff]
  %v1377 = vld [vmem:[%s3 + $0x20] sm:$0xff]
  %v1378 = vld [vmem:[%s3 + $0x28] sm:$0xff]
  %v1379 = vld [vmem:[%s3 + $0x30] sm:$0xff]
  %v1380 = vld [vmem:[%s3 + $0x38] sm:$0xff]
  %v1381 = vld [vmem:[%s3 + $0x40] sm:$0xff]
  %v1382 = vld [vmem:[%s3 + $0x48] sm:$0xff]
  %v1383 = vld [vmem:[%s3 + $0x50] sm:$0xff]
  %v1384 = vld [vmem:[%s3 + $0x58] sm:$0xff]
  %v1385 = vld [vmem:[%s3 + $0x60] sm:$0xff]
  %v1386 = vld [vmem:[%s3 + $0x68] sm:$0xff]
  %v1387 = vld [vmem:[%s3 + $0x70] sm:$0xff]
  %v1388 = vld [vmem:[%s3 + $0x78] sm:$0xff]
  %v1389 = vld [vmem:[%s3 + $0x80] sm:$0xff]
  %v1390 = vld [vmem:[%s3 + $0x88] sm:$0xff]
  %v1391 = vld [vmem:[%s3 + $0x90] sm:$0xff]
  %v1392 = vld [vmem:[%s3 + $0x98] sm:$0xff]
  %v1393 = vld [vmem:[%s3 + $0xa0] sm:$0xff]
  %v1394 = vld [vmem:[%s3 + $0xa8] sm:$0xff]
  %v1395 = vld [vmem:[%s3 + $0xb0] sm:$0xff]
  %v1396 = vld [vmem:[%s3 + $0xb8] sm:$0xff]
  %v1397 = vld [vmem:[%s3 + $0xc0] sm:$0xff]
  %v1398 = vld [vmem:[%s3 + $0xc8] sm:$0xff]
  %v1399 = vld [vmem:[%s3 + $0xd0] sm:$0xff]
  %v1400 = vld [vmem:[%s3 + $0xd8] sm:$0xff]
  %v1401 = vld [vmem:[%s3 + $0xe0] sm:$0xff]
  %v1402 = vld [vmem:[%s3 + $0xe8] sm:$0xff]
  %v1403 = vld [vmem:[%s3 + $0xf0] sm:$0xff]
  %v1404 = vld [vmem:[%s3 + $0xf8] sm:$0xff]
  %v1405 = vld [vmem:[%s3 + $0x100] sm:$0xff]
  %v1406 = vld [vmem:[%s3 + $0x108] sm:$0xff]
  %v1407 = vld [vmem:[%s3 + $0x110] sm:$0xff]
  %v1408 = vld [vmem:[%s3 + $0x118] sm:$0xff]
  %v1409 = vld [vmem:[%s3 + $0x120] sm:$0xff]
  %v1410 = vld [vmem:[%s3 + $0x128] sm:$0xff]
  %v1411 = vld [vmem:[%s3 + $0x130] sm:$0xff]
  %v1412 = vld [vmem:[%s3 + $0x138] sm:$0xff]
  %v1413 = vld [vmem:[%s3 + $0x140] sm:$0xff]
  %v1414 = vld [vmem:[%s3 + $0x148] sm:$0xff]
  %v1415 = vld [vmem:[%s3 + $0x150] sm:$0xff]
  %v1416 = vld [vmem:[%s3 + $0x158] sm:$0xff]
  %v1417 = vld [vmem:[%s3 + $0x160] sm:$0xff]
  %v1418 = vld [vmem:[%s3 + $0x168] sm:$0xff]
  %v1419 = vld [vmem:[%s3 + $0x170] sm:$0xff]
  %v1420 = vld [vmem:[%s3 + $0x178] sm:$0xff]
  %v1421 = vld [vmem:[%s3 + $0x180] sm:$0xff]
  %v1422 = vld [vmem:[%s3 + $0x188] sm:$0xff]
  %v1423 = vld [vmem:[%s3 + $0x190] sm:$0xff]
  %v1424 = vld [vmem:[%s3 + $0x198] sm:$0xff]
  %v1425 = vld [vmem:[%s3 + $0x1a0] sm:$0xff]
  %v1426 = vld [vmem:[%s3 + $0x1a8] sm:$0xff]
  %v1427 = vld [vmem:[%s3 + $0x1b0] sm:$0xff]
  %v1428 = vld [vmem:[%s3 + $0x1b8] sm:$0xff]
  %v1429 = vld [vmem:[%s3 + $0x1c0] sm:$0xff]
  %v1430 = vld [vmem:[%s3 + $0x1c8] sm:$0xff]
  %v1431 = vld [vmem:[%s3 + $0x1d0] sm:$0xff]
  %v1432 = vld [vmem:[%s3 + $0x1d8] sm:$0xff]
  %v1433 = vld [vmem:[%s3 + $0x1e0] sm:$0xff]
  %v1434 = vld [vmem:[%s3 + $0x1e8] sm:$0xff]
  %v1435 = vld [vmem:[%s3 + $0x1f0] sm:$0xff]
  %v1436 = vld [vmem:[%s3 + $0x1f8] sm:$0xff]
  %v1437 = vld [vmem:[%s3 + $0x200] sm:$0xff]
  %v1438 = vld [vmem:[%s3 + $0x208] sm:$0xff]
  %v1439 = vld [vmem:[%s3 + $0x210] sm:$0xff]
  %v1440 = vld [vmem:[%s3 + $0x218] sm:$0xff]
  %v1441 = vld [vmem:[%s3 + $0x220] sm:$0xff]
  %v1442 = vld [vmem:[%s3 + $0x228] sm:$0xff]
  %v1443 = vld [vmem:[%s3 + $0x230] sm:$0xff]
  %v1444 = vld [vmem:[%s3 + $0x238] sm:$0xff]
  %v1445 = vld [vmem:[%s3 + $0x240] sm:$0xff]
  %v1446 = vld [vmem:[%s3 + $0x248] sm:$0xff]
  %v1447 = vld [vmem:[%s3 + $0x250] sm:$0xff]
  %v1448 = vld [vmem:[%s3 + $0x258] sm:$0xff]
  %v1449 = vld [vmem:[%s3 + $0x260] sm:$0xff]
  %v1450 = vld [vmem:[%s3 + $0x268] sm:$0xff]
  %v1451 = vld [vmem:[%s3 + $0x270] sm:$0xff]
  %v1452 = vld [vmem:[%s3 + $0x278] sm:$0xff]
  %v1453 = vld [vmem:[%s3 + $0x280] sm:$0xff]
  %v1454 = vld [vmem:[%s3 + $0x288] sm:$0xff]
  %v1455 = vld [vmem:[%s3 + $0x290] sm:$0xff]
  %v1456 = vld [vmem:[%s3 + $0x298] sm:$0xff]
  %v1457 = vld [vmem:[%s3 + $0x2a0] sm:$0xff]
  %v1458 = vld [vmem:[%s3 + $0x2a8] sm:$0xff]
  %v1459 = vld [vmem:[%s3 + $0x2b0] sm:$0xff]
  %v1460 = vld [vmem:[%s3 + $0x2b8] sm:$0xff]
  %v1461 = vld [vmem:[%s3 + $0x2c0] sm:$0xff]
  %v1462 = vld [vmem:[%s3 + $0x2c8] sm:$0xff]
  %v1463 = vld [vmem:[%s3 + $0x2d0] sm:$0xff]
  %v1464 = vld [vmem:[%s3 + $0x2d8] sm:$0xff]
  %v1465 = vld [vmem:[%s3 + $0x2e0] sm:$0xff]
  %v1466 = vld [vmem:[%s3 + $0x2e8] sm:$0xff]
  %v1467 = vld [vmem:[%s3 + $0x2f0] sm:$0xff]
  %v1468 = vld [vmem:[%s3 + $0x2f8] sm:$0xff]
  %v1469 = vld [vmem:[%s3 + $0x300] sm:$0xff]
  %v1470 = vld [vmem:[%s3 + $0x308] sm:$0xff]
  %v1471 = vld [vmem:[%s3 + $0x310] sm:$0xff]
  %v1472 = vld [vmem:[%s3 + $0x318] sm:$0xff]
  %v1473 = vld [vmem:[%s3 + $0x320] sm:$0xff]
  %v1474 = vld [vmem:[%s3 + $0x328] sm:$0xff]
  %v1475 = vld [vmem:[%s3 + $0x330] sm:$0xff]
  %v1476 = vld [vmem:[%s3 + $0x338] sm:$0xff]
  %v1477 = vld [vmem:[%s3 + $0x340] sm:$0xff]
  %v1478 = vld [vmem:[%s3 + $0x348] sm:$0xff]
  %v1479 = vld [vmem:[%s3 + $0x350] sm:$0xff]
  %v1480 = vld [vmem:[%s3 + $0x358] sm:$0xff]
  %v1481 = vld [vmem:[%s3 + $0x360] sm:$0xff]
  %v1482 = vld [vmem:[%s3 + $0x368] sm:$0xff]
  %v1483 = vld [vmem:[%s3 + $0x370] sm:$0xff]
  %v1484 = vld [vmem:[%s3 + $0x378] sm:$0xff]
  %v1485 = vld [vmem:[%s3 + $0x380] sm:$0xff]
  %v1486 = vld [vmem:[%s3 + $0x388] sm:$0xff]
  %v1487 = vld [vmem:[%s3 + $0x390] sm:$0xff]
  %v1488 = vld [vmem:[%s3 + $0x398] sm:$0xff]
  %v1489 = vld [vmem:[%s3 + $0x3a0] sm:$0xff]
  %v1490 = vld [vmem:[%s3 + $0x3a8] sm:$0xff]
  %v1491 = vld [vmem:[%s3 + $0x3b0] sm:$0xff]
  %v1492 = vld [vmem:[%s3 + $0x3b8] sm:$0xff]
  %v1493 = vld [vmem:[%s3 + $0x3c0] sm:$0xff]
  %v1494 = vld [vmem:[%s3 + $0x3c8] sm:$0xff]
  %v1495 = vld [vmem:[%s3 + $0x3d0] sm:$0xff]
  %v1496 = vld [vmem:[%s3 + $0x3d8] sm:$0xff]
  %v1497 = vld [vmem:[%s3 + $0x3e0] sm:$0xff]
  %v1498 = vld [vmem:[%s3 + $0x3e8] sm:$0xff]
  %v1499 = vld [vmem:[%s3 + $0x3f0] sm:$0xff]
  %v1500 = vld [vmem:[%s3 + $0x3f8] sm:$0xff]
  %v1501 = vpack.c.bf16 %v1310, %v1309
  %v1502 = vpack.c.bf16 %v1312, %v1311
  %v1503 = vpack.c.bf16 %v1314, %v1313
  %v1504 = vpack.c.bf16 %v1316, %v1315
  %v1505 = vpack.c.bf16 %v1318, %v1317
  %v1506 = vpack.c.bf16 %v1320, %v1319
  %v1507 = vpack.c.bf16 %v1322, %v1321
  %v1508 = vpack.c.bf16 %v1324, %v1323
  %v1509 = vpack.c.bf16 %v1326, %v1325
  %v1510 = vpack.c.bf16 %v1328, %v1327
  %v1511 = vpack.c.bf16 %v1330, %v1329
  %v1512 = vpack.c.bf16 %v1332, %v1331
  %v1513 = vpack.c.bf16 %v1334, %v1333
  %v1514 = vpack.c.bf16 %v1336, %v1335
  %v1515 = vpack.c.bf16 %v1338, %v1337
  %v1516 = vpack.c.bf16 %v1340, %v1339
  %v1517 = vpack.c.bf16 %v1342, %v1341
  %v1518 = vpack.c.bf16 %v1344, %v1343
  %v1519 = vpack.c.bf16 %v1346, %v1345
  %v1520 = vpack.c.bf16 %v1348, %v1347
  %v1521 = vpack.c.bf16 %v1350, %v1349
  %v1522 = vpack.c.bf16 %v1352, %v1351
  %v1523 = vpack.c.bf16 %v1354, %v1353
  %v1524 = vpack.c.bf16 %v1356, %v1355
  %v1525 = vpack.c.bf16 %v1358, %v1357
  %v1526 = vpack.c.bf16 %v1360, %v1359
  %v1527 = vpack.c.bf16 %v1362, %v1361
  %v1528 = vpack.c.bf16 %v1364, %v1363
  %v1529 = vpack.c.bf16 %v1366, %v1365
  %v1530 = vpack.c.bf16 %v1368, %v1367
  %v1531 = vpack.c.bf16 %v1370, %v1369
  %v1532 = vpack.c.bf16 %v1372, %v1371
  %v1533 = vld [vmem:[%s4] sm:$0xff]
  %v1534 = vld [vmem:[%s4 + $0x8] sm:$0xff]
  %v1535 = vld [vmem:[%s4 + $0x10] sm:$0xff]
  %v1536 = vld [vmem:[%s4 + $0x18] sm:$0xff]
  %v1537 = vld [vmem:[%s4 + $0x20] sm:$0xff]
  %v1538 = vld [vmem:[%s4 + $0x28] sm:$0xff]
  %v1539 = vld [vmem:[%s4 + $0x30] sm:$0xff]
  %v1540 = vld [vmem:[%s4 + $0x38] sm:$0xff]
  %v1541 = vld [vmem:[%s4 + $0x40] sm:$0xff]
  %v1542 = vld [vmem:[%s4 + $0x48] sm:$0xff]
  %v1543 = vld [vmem:[%s4 + $0x50] sm:$0xff]
  %v1544 = vld [vmem:[%s4 + $0x58] sm:$0xff]
  %v1545 = vld [vmem:[%s4 + $0x60] sm:$0xff]
  %v1546 = vld [vmem:[%s4 + $0x68] sm:$0xff]
  %v1547 = vld [vmem:[%s4 + $0x70] sm:$0xff]
  %v1548 = vld [vmem:[%s4 + $0x78] sm:$0xff]
  %v1549 = vld [vmem:[%s4 + $0x80] sm:$0xff]
  %v1550 = vld [vmem:[%s4 + $0x88] sm:$0xff]
  %v1551 = vld [vmem:[%s4 + $0x90] sm:$0xff]
  %v1552 = vld [vmem:[%s4 + $0x98] sm:$0xff]
  %v1553 = vld [vmem:[%s4 + $0xa0] sm:$0xff]
  %v1554 = vld [vmem:[%s4 + $0xa8] sm:$0xff]
  %v1555 = vld [vmem:[%s4 + $0xb0] sm:$0xff]
  %v1556 = vld [vmem:[%s4 + $0xb8] sm:$0xff]
  %v1557 = vld [vmem:[%s4 + $0xc0] sm:$0xff]
  %v1558 = vld [vmem:[%s4 + $0xc8] sm:$0xff]
  %v1559 = vld [vmem:[%s4 + $0xd0] sm:$0xff]
  %v1560 = vld [vmem:[%s4 + $0xd8] sm:$0xff]
  %v1561 = vld [vmem:[%s4 + $0xe0] sm:$0xff]
  %v1562 = vld [vmem:[%s4 + $0xe8] sm:$0xff]
  %v1563 = vld [vmem:[%s4 + $0xf0] sm:$0xff]
  %v1564 = vld [vmem:[%s4 + $0xf8] sm:$0xff]
  %v1565 = vld [vmem:[%s4 + $0x100] sm:$0xff]
  %v1566 = vld [vmem:[%s4 + $0x108] sm:$0xff]
  %v1567 = vld [vmem:[%s4 + $0x110] sm:$0xff]
  %v1568 = vld [vmem:[%s4 + $0x118] sm:$0xff]
  %v1569 = vld [vmem:[%s4 + $0x120] sm:$0xff]
  %v1570 = vld [vmem:[%s4 + $0x128] sm:$0xff]
  %v1571 = vld [vmem:[%s4 + $0x130] sm:$0xff]
  %v1572 = vld [vmem:[%s4 + $0x138] sm:$0xff]
  %v1573 = vld [vmem:[%s4 + $0x140] sm:$0xff]
  %v1574 = vld [vmem:[%s4 + $0x148] sm:$0xff]
  %v1575 = vld [vmem:[%s4 + $0x150] sm:$0xff]
  %v1576 = vld [vmem:[%s4 + $0x158] sm:$0xff]
  %v1577 = vld [vmem:[%s4 + $0x160] sm:$0xff]
  %v1578 = vld [vmem:[%s4 + $0x168] sm:$0xff]
  %v1579 = vld [vmem:[%s4 + $0x170] sm:$0xff]
  %v1580 = vld [vmem:[%s4 + $0x178] sm:$0xff]
  %v1581 = vld [vmem:[%s4 + $0x180] sm:$0xff]
  %v1582 = vld [vmem:[%s4 + $0x188] sm:$0xff]
  %v1583 = vld [vmem:[%s4 + $0x190] sm:$0xff]
  %v1584 = vld [vmem:[%s4 + $0x198] sm:$0xff]
  %v1585 = vld [vmem:[%s4 + $0x1a0] sm:$0xff]
  %v1586 = vld [vmem:[%s4 + $0x1a8] sm:$0xff]
  %v1587 = vld [vmem:[%s4 + $0x1b0] sm:$0xff]
  %v1588 = vld [vmem:[%s4 + $0x1b8] sm:$0xff]
  %v1589 = vld [vmem:[%s4 + $0x1c0] sm:$0xff]
  %v1590 = vld [vmem:[%s4 + $0x1c8] sm:$0xff]
  %v1591 = vld [vmem:[%s4 + $0x1d0] sm:$0xff]
  %v1592 = vld [vmem:[%s4 + $0x1d8] sm:$0xff]
  %v1593 = vld [vmem:[%s4 + $0x1e0] sm:$0xff]
  %v1594 = vld [vmem:[%s4 + $0x1e8] sm:$0xff]
  %v1595 = vld [vmem:[%s4 + $0x1f0] sm:$0xff]
  %v1596 = vld [vmem:[%s4 + $0x1f8] sm:$0xff]
  %1598 = vset.pattern.permute.xlu0 0
  %1599 = vperm.xlu0 %1598, %v1533
  %v1600 = vpop.permute.xlu0 %1599
  %1603 = vset.pattern.permute.xlu0 0
  %1604 = vperm.xlu0 %1603, %v1534
  %v1605 = vpop.permute.xlu0 %1604
  %1608 = vset.pattern.permute.xlu0 0
  %1609 = vperm.xlu0 %1608, %v1535
  %v1610 = vpop.permute.xlu0 %1609
  %1613 = vset.pattern.permute.xlu0 0
  %1614 = vperm.xlu0 %1613, %v1536
  %v1615 = vpop.permute.xlu0 %1614
  %1618 = vset.pattern.permute.xlu0 0
  %1619 = vperm.xlu0 %1618, %v1537
  %v1620 = vpop.permute.xlu0 %1619
  %1623 = vset.pattern.permute.xlu0 0
  %1624 = vperm.xlu0 %1623, %v1538
  %v1625 = vpop.permute.xlu0 %1624
  %1628 = vset.pattern.permute.xlu0 0
  %1629 = vperm.xlu0 %1628, %v1539
  %v1630 = vpop.permute.xlu0 %1629
  %1633 = vset.pattern.permute.xlu0 0
  %1634 = vperm.xlu0 %1633, %v1540
  %v1635 = vpop.permute.xlu0 %1634
  %1638 = vset.pattern.permute.xlu0 0
  %1639 = vperm.xlu0 %1638, %v1541
  %v1640 = vpop.permute.xlu0 %1639
  %1643 = vset.pattern.permute.xlu0 0
  %1644 = vperm.xlu0 %1643, %v1542
  %v1645 = vpop.permute.xlu0 %1644
  %1648 = vset.pattern.permute.xlu0 0
  %1649 = vperm.xlu0 %1648, %v1543
  %v1650 = vpop.permute.xlu0 %1649
  %1653 = vset.pattern.permute.xlu0 0
  %1654 = vperm.xlu0 %1653, %v1544
  %v1655 = vpop.permute.xlu0 %1654
  %1658 = vset.pattern.permute.xlu0 0
  %1659 = vperm.xlu0 %1658, %v1545
  %v1660 = vpop.permute.xlu0 %1659
  %1663 = vset.pattern.permute.xlu0 0
  %1664 = vperm.xlu0 %1663, %v1546
  %v1665 = vpop.permute.xlu0 %1664
  %1668 = vset.pattern.permute.xlu0 0
  %1669 = vperm.xlu0 %1668, %v1547
  %v1670 = vpop.permute.xlu0 %1669
  %1673 = vset.pattern.permute.xlu0 0
  %1674 = vperm.xlu0 %1673, %v1548
  %v1675 = vpop.permute.xlu0 %1674
  %1678 = vset.pattern.permute.xlu0 0
  %1679 = vperm.xlu0 %1678, %v1549
  %v1680 = vpop.permute.xlu0 %1679
  %1683 = vset.pattern.permute.xlu0 0
  %1684 = vperm.xlu0 %1683, %v1550
  %v1685 = vpop.permute.xlu0 %1684
  %1688 = vset.pattern.permute.xlu0 0
  %1689 = vperm.xlu0 %1688, %v1551
  %v1690 = vpop.permute.xlu0 %1689
  %1693 = vset.pattern.permute.xlu0 0
  %1694 = vperm.xlu0 %1693, %v1552
  %v1695 = vpop.permute.xlu0 %1694
  %1698 = vset.pattern.permute.xlu0 0
  %1699 = vperm.xlu0 %1698, %v1553
  %v1700 = vpop.permute.xlu0 %1699
  %1703 = vset.pattern.permute.xlu0 0
  %1704 = vperm.xlu0 %1703, %v1554
  %v1705 = vpop.permute.xlu0 %1704
  %1708 = vset.pattern.permute.xlu0 0
  %1709 = vperm.xlu0 %1708, %v1555
  %v1710 = vpop.permute.xlu0 %1709
  %1713 = vset.pattern.permute.xlu0 0
  %1714 = vperm.xlu0 %1713, %v1556
  %v1715 = vpop.permute.xlu0 %1714
  %1718 = vset.pattern.permute.xlu0 0
  %1719 = vperm.xlu0 %1718, %v1557
  %v1720 = vpop.permute.xlu0 %1719
  %1723 = vset.pattern.permute.xlu0 0
  %1724 = vperm.xlu0 %1723, %v1558
  %v1725 = vpop.permute.xlu0 %1724
  %1728 = vset.pattern.permute.xlu0 0
  %1729 = vperm.xlu0 %1728, %v1559
  %v1730 = vpop.permute.xlu0 %1729
  %1733 = vset.pattern.permute.xlu0 0
  %1734 = vperm.xlu0 %1733, %v1560
  %v1735 = vpop.permute.xlu0 %1734
  %1738 = vset.pattern.permute.xlu0 0
  %1739 = vperm.xlu0 %1738, %v1561
  %v1740 = vpop.permute.xlu0 %1739
  %1743 = vset.pattern.permute.xlu0 0
  %1744 = vperm.xlu0 %1743, %v1562
  %v1745 = vpop.permute.xlu0 %1744
  %1748 = vset.pattern.permute.xlu0 0
  %1749 = vperm.xlu0 %1748, %v1563
  %v1750 = vpop.permute.xlu0 %1749
  %1753 = vset.pattern.permute.xlu0 0
  %1754 = vperm.xlu0 %1753, %v1564
  %v1755 = vpop.permute.xlu0 %1754
  %1758 = vset.pattern.permute.xlu0 0
  %1759 = vperm.xlu0 %1758, %v1565
  %v1760 = vpop.permute.xlu0 %1759
  %1763 = vset.pattern.permute.xlu0 0
  %1764 = vperm.xlu0 %1763, %v1566
  %v1765 = vpop.permute.xlu0 %1764
  %1768 = vset.pattern.permute.xlu0 0
  %1769 = vperm.xlu0 %1768, %v1567
  %v1770 = vpop.permute.xlu0 %1769
  %1773 = vset.pattern.permute.xlu0 0
  %1774 = vperm.xlu0 %1773, %v1568
  %v1775 = vpop.permute.xlu0 %1774
  %1778 = vset.pattern.permute.xlu0 0
  %1779 = vperm.xlu0 %1778, %v1569
  %v1780 = vpop.permute.xlu0 %1779
  %1783 = vset.pattern.permute.xlu0 0
  %1784 = vperm.xlu0 %1783, %v1570
  %v1785 = vpop.permute.xlu0 %1784
  %1788 = vset.pattern.permute.xlu0 0
  %1789 = vperm.xlu0 %1788, %v1571
  %v1790 = vpop.permute.xlu0 %1789
  %1793 = vset.pattern.permute.xlu0 0
  %1794 = vperm.xlu0 %1793, %v1572
  %v1795 = vpop.permute.xlu0 %1794
  %1798 = vset.pattern.permute.xlu0 0
  %1799 = vperm.xlu0 %1798, %v1573
  %v1800 = vpop.permute.xlu0 %1799
  %1803 = vset.pattern.permute.xlu0 0
  %1804 = vperm.xlu0 %1803, %v1574
  %v1805 = vpop.permute.xlu0 %1804
  %1808 = vset.pattern.permute.xlu0 0
  %1809 = vperm.xlu0 %1808, %v1575
  %v1810 = vpop.permute.xlu0 %1809
  %1813 = vset.pattern.permute.xlu0 0
  %1814 = vperm.xlu0 %1813, %v1576
  %v1815 = vpop.permute.xlu0 %1814
  %1818 = vset.pattern.permute.xlu0 0
  %1819 = vperm.xlu0 %1818, %v1577
  %v1820 = vpop.permute.xlu0 %1819
  %1823 = vset.pattern.permute.xlu0 0
  %1824 = vperm.xlu0 %1823, %v1578
  %v1825 = vpop.permute.xlu0 %1824
  %1828 = vset.pattern.permute.xlu0 0
  %1829 = vperm.xlu0 %1828, %v1579
  %v1830 = vpop.permute.xlu0 %1829
  %1833 = vset.pattern.permute.xlu0 0
  %1834 = vperm.xlu0 %1833, %v1580
  %v1835 = vpop.permute.xlu0 %1834
  %1838 = vset.pattern.permute.xlu0 0
  %1839 = vperm.xlu0 %1838, %v1581
  %v1840 = vpop.permute.xlu0 %1839
  %1843 = vset.pattern.permute.xlu0 0
  %1844 = vperm.xlu0 %1843, %v1582
  %v1845 = vpop.permute.xlu0 %1844
  %1848 = vset.pattern.permute.xlu0 0
  %1849 = vperm.xlu0 %1848, %v1583
  %v1850 = vpop.permute.xlu0 %1849
  %1853 = vset.pattern.permute.xlu0 0
  %1854 = vperm.xlu0 %1853, %v1584
  %v1855 = vpop.permute.xlu0 %1854
  %1858 = vset.pattern.permute.xlu0 0
  %1859 = vperm.xlu0 %1858, %v1585
  %v1860 = vpop.permute.xlu0 %1859
  %1863 = vset.pattern.permute.xlu0 0
  %1864 = vperm.xlu0 %1863, %v1586
  %v1865 = vpop.permute.xlu0 %1864
  %1868 = vset.pattern.permute.xlu0 0
  %1869 = vperm.xlu0 %1868, %v1587
  %v1870 = vpop.permute.xlu0 %1869
  %1873 = vset.pattern.permute.xlu0 0
  %1874 = vperm.xlu0 %1873, %v1588
  %v1875 = vpop.permute.xlu0 %1874
  %1878 = vset.pattern.permute.xlu0 0
  %1879 = vperm.xlu0 %1878, %v1589
  %v1880 = vpop.permute.xlu0 %1879
  %1883 = vset.pattern.permute.xlu0 0
  %1884 = vperm.xlu0 %1883, %v1590
  %v1885 = vpop.permute.xlu0 %1884
  %1888 = vset.pattern.permute.xlu0 0
  %1889 = vperm.xlu0 %1888, %v1591
  %v1890 = vpop.permute.xlu0 %1889
  %1893 = vset.pattern.permute.xlu0 0
  %1894 = vperm.xlu0 %1893, %v1592
  %v1895 = vpop.permute.xlu0 %1894
  %1898 = vset.pattern.permute.xlu0 0
  %1899 = vperm.xlu0 %1898, %v1593
  %v1900 = vpop.permute.xlu0 %1899
  %1903 = vset.pattern.permute.xlu0 0
  %1904 = vperm.xlu0 %1903, %v1594
  %v1905 = vpop.permute.xlu0 %1904
  %1908 = vset.pattern.permute.xlu0 0
  %1909 = vperm.xlu0 %1908, %v1595
  %v1910 = vpop.permute.xlu0 %1909
  %1913 = vset.pattern.permute.xlu0 0
  %1914 = vperm.xlu0 %1913, %v1596
  %v1915 = vpop.permute.xlu0 %1914
  %v2045 = vunpack.c.l.b16 %v1373
  %v2046 = vunpack.c.h.b16 %v1373
  %v2047 = vunpack.c.l.b16 %v1374
  %v2048 = vunpack.c.h.b16 %v1374
  %v2049 = vunpack.c.l.b16 %v1375
  %v2050 = vunpack.c.h.b16 %v1375
  %v2051 = vunpack.c.l.b16 %v1376
  %v2052 = vunpack.c.h.b16 %v1376
  %v2053 = vunpack.c.l.b16 %v1377
  %v2054 = vunpack.c.h.b16 %v1377
  %v2055 = vunpack.c.l.b16 %v1378
  %v2056 = vunpack.c.h.b16 %v1378
  %v2057 = vunpack.c.l.b16 %v1379
  %v2058 = vunpack.c.h.b16 %v1379
  %v2059 = vunpack.c.l.b16 %v1380
  %v2060 = vunpack.c.h.b16 %v1380
  %v2061 = vunpack.c.l.b16 %v1381
  %v2062 = vunpack.c.h.b16 %v1381
  %v2063 = vunpack.c.l.b16 %v1382
  %v2064 = vunpack.c.h.b16 %v1382
  %v2065 = vunpack.c.l.b16 %v1383
  %v2066 = vunpack.c.h.b16 %v1383
  %v2067 = vunpack.c.l.b16 %v1384
  %v2068 = vunpack.c.h.b16 %v1384
  %v2069 = vunpack.c.l.b16 %v1385
  %v2070 = vunpack.c.h.b16 %v1385
  %v2071 = vunpack.c.l.b16 %v1386
  %v2072 = vunpack.c.h.b16 %v1386
  %v2073 = vunpack.c.l.b16 %v1387
  %v2074 = vunpack.c.h.b16 %v1387
  %v2075 = vunpack.c.l.b16 %v1388
  %v2076 = vunpack.c.h.b16 %v1388
  %v2077 = vunpack.c.l.b16 %v1389
  %v2078 = vunpack.c.h.b16 %v1389
  %v2079 = vunpack.c.l.b16 %v1390
  %v2080 = vunpack.c.h.b16 %v1390
  %v2081 = vunpack.c.l.b16 %v1391
  %v2082 = vunpack.c.h.b16 %v1391
  %v2083 = vunpack.c.l.b16 %v1392
  %v2084 = vunpack.c.h.b16 %v1392
  %v2085 = vunpack.c.l.b16 %v1393
  %v2086 = vunpack.c.h.b16 %v1393
  %v2087 = vunpack.c.l.b16 %v1394
  %v2088 = vunpack.c.h.b16 %v1394
  %v2089 = vunpack.c.l.b16 %v1395
  %v2090 = vunpack.c.h.b16 %v1395
  %v2091 = vunpack.c.l.b16 %v1396
  %v2092 = vunpack.c.h.b16 %v1396
  %v2093 = vunpack.c.l.b16 %v1397
  %v2094 = vunpack.c.h.b16 %v1397
  %v2095 = vunpack.c.l.b16 %v1398
  %v2096 = vunpack.c.h.b16 %v1398
  %v2097 = vunpack.c.l.b16 %v1399
  %v2098 = vunpack.c.h.b16 %v1399
  %v2099 = vunpack.c.l.b16 %v1400
  %v2100 = vunpack.c.h.b16 %v1400
  %v2101 = vunpack.c.l.b16 %v1401
  %v2102 = vunpack.c.h.b16 %v1401
  %v2103 = vunpack.c.l.b16 %v1402
  %v2104 = vunpack.c.h.b16 %v1402
  %v2105 = vunpack.c.l.b16 %v1403
  %v2106 = vunpack.c.h.b16 %v1403
  %v2107 = vunpack.c.l.b16 %v1404
  %v2108 = vunpack.c.h.b16 %v1404
  %v2109 = vunpack.c.l.b16 %v1405
  %v2110 = vunpack.c.h.b16 %v1405
  %v2111 = vunpack.c.l.b16 %v1406
  %v2112 = vunpack.c.h.b16 %v1406
  %v2113 = vunpack.c.l.b16 %v1407
  %v2114 = vunpack.c.h.b16 %v1407
  %v2115 = vunpack.c.l.b16 %v1408
  %v2116 = vunpack.c.h.b16 %v1408
  %v2117 = vunpack.c.l.b16 %v1409
  %v2118 = vunpack.c.h.b16 %v1409
  %v2119 = vunpack.c.l.b16 %v1410
  %v2120 = vunpack.c.h.b16 %v1410
  %v2121 = vunpack.c.l.b16 %v1411
  %v2122 = vunpack.c.h.b16 %v1411
  %v2123 = vunpack.c.l.b16 %v1412
  %v2124 = vunpack.c.h.b16 %v1412
  %v2125 = vunpack.c.l.b16 %v1413
  %v2126 = vunpack.c.h.b16 %v1413
  %v2127 = vunpack.c.l.b16 %v1414
  %v2128 = vunpack.c.h.b16 %v1414
  %v2129 = vunpack.c.l.b16 %v1415
  %v2130 = vunpack.c.h.b16 %v1415
  %v2131 = vunpack.c.l.b16 %v1416
  %v2132 = vunpack.c.h.b16 %v1416
  %v2133 = vunpack.c.l.b16 %v1417
  %v2134 = vunpack.c.h.b16 %v1417
  %v2135 = vunpack.c.l.b16 %v1418
  %v2136 = vunpack.c.h.b16 %v1418
  %v2137 = vunpack.c.l.b16 %v1419
  %v2138 = vunpack.c.h.b16 %v1419
  %v2139 = vunpack.c.l.b16 %v1420
  %v2140 = vunpack.c.h.b16 %v1420
  %v2141 = vunpack.c.l.b16 %v1421
  %v2142 = vunpack.c.h.b16 %v1421
  %v2143 = vunpack.c.l.b16 %v1422
  %v2144 = vunpack.c.h.b16 %v1422
  %v2145 = vunpack.c.l.b16 %v1423
  %v2146 = vunpack.c.h.b16 %v1423
  %v2147 = vunpack.c.l.b16 %v1424
  %v2148 = vunpack.c.h.b16 %v1424
  %v2149 = vunpack.c.l.b16 %v1425
  %v2150 = vunpack.c.h.b16 %v1425
  %v2151 = vunpack.c.l.b16 %v1426
  %v2152 = vunpack.c.h.b16 %v1426
  %v2153 = vunpack.c.l.b16 %v1427
  %v2154 = vunpack.c.h.b16 %v1427
  %v2155 = vunpack.c.l.b16 %v1428
  %v2156 = vunpack.c.h.b16 %v1428
  %v2157 = vunpack.c.l.b16 %v1429
  %v2158 = vunpack.c.h.b16 %v1429
  %v2159 = vunpack.c.l.b16 %v1430
  %v2160 = vunpack.c.h.b16 %v1430
  %v2161 = vunpack.c.l.b16 %v1431
  %v2162 = vunpack.c.h.b16 %v1431
  %v2163 = vunpack.c.l.b16 %v1432
  %v2164 = vunpack.c.h.b16 %v1432
  %v2165 = vunpack.c.l.b16 %v1433
  %v2166 = vunpack.c.h.b16 %v1433
  %v2167 = vunpack.c.l.b16 %v1434
  %v2168 = vunpack.c.h.b16 %v1434
  %v2169 = vunpack.c.l.b16 %v1435
  %v2170 = vunpack.c.h.b16 %v1435
  %v2171 = vunpack.c.l.b16 %v1436
  %v2172 = vunpack.c.h.b16 %v1436
  %v2173 = vunpack.c.l.b16 %v1437
  %v2174 = vunpack.c.h.b16 %v1437
  %v2175 = vunpack.c.l.b16 %v1438
  %v2176 = vunpack.c.h.b16 %v1438
  %v2177 = vunpack.c.l.b16 %v1439
  %v2178 = vunpack.c.h.b16 %v1439
  %v2179 = vunpack.c.l.b16 %v1440
  %v2180 = vunpack.c.h.b16 %v1440
  %v2181 = vunpack.c.l.b16 %v1441
  %v2182 = vunpack.c.h.b16 %v1441
  %v2183 = vunpack.c.l.b16 %v1442
  %v2184 = vunpack.c.h.b16 %v1442
  %v2185 = vunpack.c.l.b16 %v1443
  %v2186 = vunpack.c.h.b16 %v1443
  %v2187 = vunpack.c.l.b16 %v1444
  %v2188 = vunpack.c.h.b16 %v1444
  %v2189 = vunpack.c.l.b16 %v1445
  %v2190 = vunpack.c.h.b16 %v1445
  %v2191 = vunpack.c.l.b16 %v1446
  %v2192 = vunpack.c.h.b16 %v1446
  %v2193 = vunpack.c.l.b16 %v1447
  %v2194 = vunpack.c.h.b16 %v1447
  %v2195 = vunpack.c.l.b16 %v1448
  %v2196 = vunpack.c.h.b16 %v1448
  %v2197 = vunpack.c.l.b16 %v1449
  %v2198 = vunpack.c.h.b16 %v1449
  %v2199 = vunpack.c.l.b16 %v1450
  %v2200 = vunpack.c.h.b16 %v1450
  %v2201 = vunpack.c.l.b16 %v1451
  %v2202 = vunpack.c.h.b16 %v1451
  %v2203 = vunpack.c.l.b16 %v1452
  %v2204 = vunpack.c.h.b16 %v1452
  %v2205 = vunpack.c.l.b16 %v1453
  %v2206 = vunpack.c.h.b16 %v1453
  %v2207 = vunpack.c.l.b16 %v1454
  %v2208 = vunpack.c.h.b16 %v1454
  %v2209 = vunpack.c.l.b16 %v1455
  %v2210 = vunpack.c.h.b16 %v1455
  %v2211 = vunpack.c.l.b16 %v1456
  %v2212 = vunpack.c.h.b16 %v1456
  %v2213 = vunpack.c.l.b16 %v1457
  %v2214 = vunpack.c.h.b16 %v1457
  %v2215 = vunpack.c.l.b16 %v1458
  %v2216 = vunpack.c.h.b16 %v1458
  %v2217 = vunpack.c.l.b16 %v1459
  %v2218 = vunpack.c.h.b16 %v1459
  %v2219 = vunpack.c.l.b16 %v1460
  %v2220 = vunpack.c.h.b16 %v1460
  %v2221 = vunpack.c.l.b16 %v1461
  %v2222 = vunpack.c.h.b16 %v1461
  %v2223 = vunpack.c.l.b16 %v1462
  %v2224 = vunpack.c.h.b16 %v1462
  %v2225 = vunpack.c.l.b16 %v1463
  %v2226 = vunpack.c.h.b16 %v1463
  %v2227 = vunpack.c.l.b16 %v1464
  %v2228 = vunpack.c.h.b16 %v1464
  %v2229 = vunpack.c.l.b16 %v1465
  %v2230 = vunpack.c.h.b16 %v1465
  %v2231 = vunpack.c.l.b16 %v1466
  %v2232 = vunpack.c.h.b16 %v1466
  %v2233 = vunpack.c.l.b16 %v1467
  %v2234 = vunpack.c.h.b16 %v1467
  %v2235 = vunpack.c.l.b16 %v1468
  %v2236 = vunpack.c.h.b16 %v1468
  %v2237 = vunpack.c.l.b16 %v1469
  %v2238 = vunpack.c.h.b16 %v1469
  %v2239 = vunpack.c.l.b16 %v1470
  %v2240 = vunpack.c.h.b16 %v1470
  %v2241 = vunpack.c.l.b16 %v1471
  %v2242 = vunpack.c.h.b16 %v1471
  %v2243 = vunpack.c.l.b16 %v1472
  %v2244 = vunpack.c.h.b16 %v1472
  %v2245 = vunpack.c.l.b16 %v1473
  %v2246 = vunpack.c.h.b16 %v1473
  %v2247 = vunpack.c.l.b16 %v1474
  %v2248 = vunpack.c.h.b16 %v1474
  %v2249 = vunpack.c.l.b16 %v1475
  %v2250 = vunpack.c.h.b16 %v1475
  %v2251 = vunpack.c.l.b16 %v1476
  %v2252 = vunpack.c.h.b16 %v1476
  %v2253 = vunpack.c.l.b16 %v1477
  %v2254 = vunpack.c.h.b16 %v1477
  %v2255 = vunpack.c.l.b16 %v1478
  %v2256 = vunpack.c.h.b16 %v1478
  %v2257 = vunpack.c.l.b16 %v1479
  %v2258 = vunpack.c.h.b16 %v1479
  %v2259 = vunpack.c.l.b16 %v1480
  %v2260 = vunpack.c.h.b16 %v1480
  %v2261 = vunpack.c.l.b16 %v1481
  %v2262 = vunpack.c.h.b16 %v1481
  %v2263 = vunpack.c.l.b16 %v1482
  %v2264 = vunpack.c.h.b16 %v1482
  %v2265 = vunpack.c.l.b16 %v1483
  %v2266 = vunpack.c.h.b16 %v1483
  %v2267 = vunpack.c.l.b16 %v1484
  %v2268 = vunpack.c.h.b16 %v1484
  %v2269 = vunpack.c.l.b16 %v1485
  %v2270 = vunpack.c.h.b16 %v1485
  %v2271 = vunpack.c.l.b16 %v1486
  %v2272 = vunpack.c.h.b16 %v1486
  %v2273 = vunpack.c.l.b16 %v1487
  %v2274 = vunpack.c.h.b16 %v1487
  %v2275 = vunpack.c.l.b16 %v1488
  %v2276 = vunpack.c.h.b16 %v1488
  %v2277 = vunpack.c.l.b16 %v1489
  %v2278 = vunpack.c.h.b16 %v1489
  %v2279 = vunpack.c.l.b16 %v1490
  %v2280 = vunpack.c.h.b16 %v1490
  %v2281 = vunpack.c.l.b16 %v1491
  %v2282 = vunpack.c.h.b16 %v1491
  %v2283 = vunpack.c.l.b16 %v1492
  %v2284 = vunpack.c.h.b16 %v1492
  %v2285 = vunpack.c.l.b16 %v1493
  %v2286 = vunpack.c.h.b16 %v1493
  %v2287 = vunpack.c.l.b16 %v1494
  %v2288 = vunpack.c.h.b16 %v1494
  %v2289 = vunpack.c.l.b16 %v1495
  %v2290 = vunpack.c.h.b16 %v1495
  %v2291 = vunpack.c.l.b16 %v1496
  %v2292 = vunpack.c.h.b16 %v1496
  %v2293 = vunpack.c.l.b16 %v1497
  %v2294 = vunpack.c.h.b16 %v1497
  %v2295 = vunpack.c.l.b16 %v1498
  %v2296 = vunpack.c.h.b16 %v1498
  %v2297 = vunpack.c.l.b16 %v1499
  %v2298 = vunpack.c.h.b16 %v1499
  %v2299 = vunpack.c.l.b16 %v1500
  %v2300 = vunpack.c.h.b16 %v1500
  %v2301 = vpack.c.b16 %v2049, %v2045
  %v2302 = vpack.c.b16 %v2050, %v2046
  %v2303 = vpack.c.b16 %v2051, %v2047
  %v2304 = vpack.c.b16 %v2052, %v2048
  %v2305 = vpack.c.b16 %v2057, %v2053
  %v2306 = vpack.c.b16 %v2058, %v2054
  %v2307 = vpack.c.b16 %v2059, %v2055
  %v2308 = vpack.c.b16 %v2060, %v2056
  %v2309 = vpack.c.b16 %v2065, %v2061
  %v2310 = vpack.c.b16 %v2066, %v2062
  %v2311 = vpack.c.b16 %v2067, %v2063
  %v2312 = vpack.c.b16 %v2068, %v2064
  %v2313 = vpack.c.b16 %v2073, %v2069
  %v2314 = vpack.c.b16 %v2074, %v2070
  %v2315 = vpack.c.b16 %v2075, %v2071
  %v2316 = vpack.c.b16 %v2076, %v2072
  %v2317 = vpack.c.b16 %v2081, %v2077
  %v2318 = vpack.c.b16 %v2082, %v2078
  %v2319 = vpack.c.b16 %v2083, %v2079
  %v2320 = vpack.c.b16 %v2084, %v2080
  %v2321 = vpack.c.b16 %v2089, %v2085
  %v2322 = vpack.c.b16 %v2090, %v2086
  %v2323 = vpack.c.b16 %v2091, %v2087
  %v2324 = vpack.c.b16 %v2092, %v2088
  %v2325 = vpack.c.b16 %v2097, %v2093
  %v2326 = vpack.c.b16 %v2098, %v2094
  %v2327 = vpack.c.b16 %v2099, %v2095
  %v2328 = vpack.c.b16 %v2100, %v2096
  %v2329 = vpack.c.b16 %v2105, %v2101
  %v2330 = vpack.c.b16 %v2106, %v2102
  %v2331 = vpack.c.b16 %v2107, %v2103
  %v2332 = vpack.c.b16 %v2108, %v2104
  %v2333 = vpack.c.b16 %v2113, %v2109
  %v2334 = vpack.c.b16 %v2114, %v2110
  %v2335 = vpack.c.b16 %v2115, %v2111
  %v2336 = vpack.c.b16 %v2116, %v2112
  %v2337 = vpack.c.b16 %v2121, %v2117
  %v2338 = vpack.c.b16 %v2122, %v2118
  %v2339 = vpack.c.b16 %v2123, %v2119
  %v2340 = vpack.c.b16 %v2124, %v2120
  %v2341 = vpack.c.b16 %v2129, %v2125
  %v2342 = vpack.c.b16 %v2130, %v2126
  %v2343 = vpack.c.b16 %v2131, %v2127
  %v2344 = vpack.c.b16 %v2132, %v2128
  %v2345 = vpack.c.b16 %v2137, %v2133
  %v2346 = vpack.c.b16 %v2138, %v2134
  %v2347 = vpack.c.b16 %v2139, %v2135
  %v2348 = vpack.c.b16 %v2140, %v2136
  %v2349 = vpack.c.b16 %v2145, %v2141
  %v2350 = vpack.c.b16 %v2146, %v2142
  %v2351 = vpack.c.b16 %v2147, %v2143
  %v2352 = vpack.c.b16 %v2148, %v2144
  %v2353 = vpack.c.b16 %v2153, %v2149
  %v2354 = vpack.c.b16 %v2154, %v2150
  %v2355 = vpack.c.b16 %v2155, %v2151
  %v2356 = vpack.c.b16 %v2156, %v2152
  %v2357 = vpack.c.b16 %v2161, %v2157
  %v2358 = vpack.c.b16 %v2162, %v2158
  %v2359 = vpack.c.b16 %v2163, %v2159
  %v2360 = vpack.c.b16 %v2164, %v2160
  %v2361 = vpack.c.b16 %v2169, %v2165
  %v2362 = vpack.c.b16 %v2170, %v2166
  %v2363 = vpack.c.b16 %v2171, %v2167
  %v2364 = vpack.c.b16 %v2172, %v2168
  %v2365 = vpack.c.b16 %v2177, %v2173
  %v2366 = vpack.c.b16 %v2178, %v2174
  %v2367 = vpack.c.b16 %v2179, %v2175
  %v2368 = vpack.c.b16 %v2180, %v2176
  %v2369 = vpack.c.b16 %v2185, %v2181
  %v2370 = vpack.c.b16 %v2186, %v2182
  %v2371 = vpack.c.b16 %v2187, %v2183
  %v2372 = vpack.c.b16 %v2188, %v2184
  %v2373 = vpack.c.b16 %v2193, %v2189
  %v2374 = vpack.c.b16 %v2194, %v2190
  %v2375 = vpack.c.b16 %v2195, %v2191
  %v2376 = vpack.c.b16 %v2196, %v2192
  %v2377 = vpack.c.b16 %v2201, %v2197
  %v2378 = vpack.c.b16 %v2202, %v2198
  %v2379 = vpack.c.b16 %v2203, %v2199
  %v2380 = vpack.c.b16 %v2204, %v2200
  %v2381 = vpack.c.b16 %v2209, %v2205
  %v2382 = vpack.c.b16 %v2210, %v2206
  %v2383 = vpack.c.b16 %v2211, %v2207
  %v2384 = vpack.c.b16 %v2212, %v2208
  %v2385 = vpack.c.b16 %v2217, %v2213
  %v2386 = vpack.c.b16 %v2218, %v2214
  %v2387 = vpack.c.b16 %v2219, %v2215
  %v2388 = vpack.c.b16 %v2220, %v2216
  %v2389 = vpack.c.b16 %v2225, %v2221
  %v2390 = vpack.c.b16 %v2226, %v2222
  %v2391 = vpack.c.b16 %v2227, %v2223
  %v2392 = vpack.c.b16 %v2228, %v2224
  %v2393 = vpack.c.b16 %v2233, %v2229
  %v2394 = vpack.c.b16 %v2234, %v2230
  %v2395 = vpack.c.b16 %v2235, %v2231
  %v2396 = vpack.c.b16 %v2236, %v2232
  %v2397 = vpack.c.b16 %v2241, %v2237
  %v2398 = vpack.c.b16 %v2242, %v2238
  %v2399 = vpack.c.b16 %v2243, %v2239
  %v2400 = vpack.c.b16 %v2244, %v2240
  %v2401 = vpack.c.b16 %v2249, %v2245
  %v2402 = vpack.c.b16 %v2250, %v2246
  %v2403 = vpack.c.b16 %v2251, %v2247
  %v2404 = vpack.c.b16 %v2252, %v2248
  %v2405 = vpack.c.b16 %v2257, %v2253
  %v2406 = vpack.c.b16 %v2258, %v2254
  %v2407 = vpack.c.b16 %v2259, %v2255
  %v2408 = vpack.c.b16 %v2260, %v2256
  %v2409 = vpack.c.b16 %v2265, %v2261
  %v2410 = vpack.c.b16 %v2266, %v2262
  %v2411 = vpack.c.b16 %v2267, %v2263
  %v2412 = vpack.c.b16 %v2268, %v2264
  %v2413 = vpack.c.b16 %v2273, %v2269
  %v2414 = vpack.c.b16 %v2274, %v2270
  %v2415 = vpack.c.b16 %v2275, %v2271
  %v2416 = vpack.c.b16 %v2276, %v2272
  %v2417 = vpack.c.b16 %v2281, %v2277
  %v2418 = vpack.c.b16 %v2282, %v2278
  %v2419 = vpack.c.b16 %v2283, %v2279
  %v2420 = vpack.c.b16 %v2284, %v2280
  %v2421 = vpack.c.b16 %v2289, %v2285
  %v2422 = vpack.c.b16 %v2290, %v2286
  %v2423 = vpack.c.b16 %v2291, %v2287
  %v2424 = vpack.c.b16 %v2292, %v2288
  %v2425 = vpack.c.b16 %v2297, %v2293
  %v2426 = vpack.c.b16 %v2298, %v2294
  %v2427 = vpack.c.b16 %v2299, %v2295
  %v2428 = vpack.c.b16 %v2300, %v2296
  %2557 = vmatpush.bf16.msra.mxu0 %v1508
  %2558 = vmatpush.bf16.msra.mxu0 %v1507
  %2559 = vmatpush.bf16.msra.mxu0 %v1506
  %2560 = vmatpush.bf16.msra.mxu0 %v1505
  %2561 = vmatpush.bf16.msra.mxu0 %v1504
  %2562 = vmatpush.bf16.msra.mxu0 %v1503
  %2563 = vmatpush.bf16.msra.mxu0 %v1502
  %2564 = vmatpush.bf16.msra.mxu0 %v1501
  %2565 = vmatmul.bf16.gmra.mxu0 %v2301
  %v2566 = vpop.f32.mrf.mxu0
  %v2567 = vadd.f32 %v1600, %v2566
  %v2568 = vpop.f32.mrf.mxu0
  %v2569 = vadd.f32 %v1605, %v2568
  %2570 = vmatmul.bf16.gmra.mxu0 %v2305
  %v2571 = vpop.f32.mrf.mxu0
  %v2572 = vadd.f32 %v1610, %v2571
  %v2573 = vpop.f32.mrf.mxu0
  %v2574 = vadd.f32 %v1615, %v2573
  %2575 = vmatmul.bf16.gmra.mxu0 %v2309
  %v2576 = vpop.f32.mrf.mxu0
  %v2577 = vadd.f32 %v1620, %v2576
  %v2578 = vpop.f32.mrf.mxu0
  %v2579 = vadd.f32 %v1625, %v2578
  %2580 = vmatmul.bf16.gmra.mxu0 %v2313
  %v2581 = vpop.f32.mrf.mxu0
  %v2582 = vadd.f32 %v1630, %v2581
  %v2583 = vpop.f32.mrf.mxu0
  %v2584 = vadd.f32 %v1635, %v2583
  %2585 = vmatmul.bf16.gmra.mxu0 %v2317
  %v2586 = vpop.f32.mrf.mxu0
  %v2587 = vadd.f32 %v1640, %v2586
  %v2588 = vpop.f32.mrf.mxu0
  %v2589 = vadd.f32 %v1645, %v2588
  %2590 = vmatmul.bf16.gmra.mxu0 %v2321
  %v2591 = vpop.f32.mrf.mxu0
  %v2592 = vadd.f32 %v1650, %v2591
  %v2593 = vpop.f32.mrf.mxu0
  %v2594 = vadd.f32 %v1655, %v2593
  %2595 = vmatmul.bf16.gmra.mxu0 %v2325
  %v2596 = vpop.f32.mrf.mxu0
  %v2597 = vadd.f32 %v1660, %v2596
  %v2598 = vpop.f32.mrf.mxu0
  %v2599 = vadd.f32 %v1665, %v2598
  %2600 = vmatmul.bf16.gmra.mxu0 %v2329
  %v2601 = vpop.f32.mrf.mxu0
  %v2602 = vadd.f32 %v1670, %v2601
  %v2603 = vpop.f32.mrf.mxu0
  %v2604 = vadd.f32 %v1675, %v2603
  %2605 = vmatmul.bf16.gmra.mxu0 %v2333
  %v2606 = vpop.f32.mrf.mxu0
  %v2607 = vadd.f32 %v1680, %v2606
  %v2608 = vpop.f32.mrf.mxu0
  %v2609 = vadd.f32 %v1685, %v2608
  %2610 = vmatmul.bf16.gmra.mxu0 %v2337
  %v2611 = vpop.f32.mrf.mxu0
  %v2612 = vadd.f32 %v1690, %v2611
  %v2613 = vpop.f32.mrf.mxu0
  %v2614 = vadd.f32 %v1695, %v2613
  %2615 = vmatmul.bf16.gmra.mxu0 %v2341
  %v2616 = vpop.f32.mrf.mxu0
  %v2617 = vadd.f32 %v1700, %v2616
  %v2618 = vpop.f32.mrf.mxu0
  %v2619 = vadd.f32 %v1705, %v2618
  %2620 = vmatmul.bf16.gmra.mxu0 %v2345
  %v2621 = vpop.f32.mrf.mxu0
  %v2622 = vadd.f32 %v1710, %v2621
  %v2623 = vpop.f32.mrf.mxu0
  %v2624 = vadd.f32 %v1715, %v2623
  %2625 = vmatmul.bf16.gmra.mxu0 %v2349
  %v2626 = vpop.f32.mrf.mxu0
  %v2627 = vadd.f32 %v1720, %v2626
  %v2628 = vpop.f32.mrf.mxu0
  %v2629 = vadd.f32 %v1725, %v2628
  %2630 = vmatmul.bf16.gmra.mxu0 %v2353
  %v2631 = vpop.f32.mrf.mxu0
  %v2632 = vadd.f32 %v1730, %v2631
  %v2633 = vpop.f32.mrf.mxu0
  %v2634 = vadd.f32 %v1735, %v2633
  %2635 = vmatmul.bf16.gmra.mxu0 %v2357
  %v2636 = vpop.f32.mrf.mxu0
  %v2637 = vadd.f32 %v1740, %v2636
  %v2638 = vpop.f32.mrf.mxu0
  %v2639 = vadd.f32 %v1745, %v2638
  %2640 = vmatmul.bf16.gmra.mxu0 %v2361
  %v2641 = vpop.f32.mrf.mxu0
  %v2642 = vadd.f32 %v1750, %v2641
  %v2643 = vpop.f32.mrf.mxu0
  %v2644 = vadd.f32 %v1755, %v2643
  %2645 = vmatmul.bf16.gmra.mxu0 %v2365
  %v2646 = vpop.f32.mrf.mxu0
  %v2647 = vadd.f32 %v1760, %v2646
  %v2648 = vpop.f32.mrf.mxu0
  %v2649 = vadd.f32 %v1765, %v2648
  %2650 = vmatmul.bf16.gmra.mxu0 %v2369
  %v2651 = vpop.f32.mrf.mxu0
  %v2652 = vadd.f32 %v1770, %v2651
  %v2653 = vpop.f32.mrf.mxu0
  %v2654 = vadd.f32 %v1775, %v2653
  %2655 = vmatmul.bf16.gmra.mxu0 %v2373
  %v2656 = vpop.f32.mrf.mxu0
  %v2657 = vadd.f32 %v1780, %v2656
  %v2658 = vpop.f32.mrf.mxu0
  %v2659 = vadd.f32 %v1785, %v2658
  %2660 = vmatmul.bf16.gmra.mxu0 %v2377
  %v2661 = vpop.f32.mrf.mxu0
  %v2662 = vadd.f32 %v1790, %v2661
  %v2663 = vpop.f32.mrf.mxu0
  %v2664 = vadd.f32 %v1795, %v2663
  %2665 = vmatmul.bf16.gmra.mxu0 %v2381
  %v2666 = vpop.f32.mrf.mxu0
  %v2667 = vadd.f32 %v1800, %v2666
  %v2668 = vpop.f32.mrf.mxu0
  %v2669 = vadd.f32 %v1805, %v2668
  %2670 = vmatmul.bf16.gmra.mxu0 %v2385
  %v2671 = vpop.f32.mrf.mxu0
  %v2672 = vadd.f32 %v1810, %v2671
  %v2673 = vpop.f32.mrf.mxu0
  %v2674 = vadd.f32 %v1815, %v2673
  %2675 = vmatmul.bf16.gmra.mxu0 %v2389
  %v2676 = vpop.f32.mrf.mxu0
  %v2677 = vadd.f32 %v1820, %v2676
  %v2678 = vpop.f32.mrf.mxu0
  %v2679 = vadd.f32 %v1825, %v2678
  %2680 = vmatmul.bf16.gmra.mxu0 %v2393
  %v2681 = vpop.f32.mrf.mxu0
  %v2682 = vadd.f32 %v1830, %v2681
  %v2683 = vpop.f32.mrf.mxu0
  %v2684 = vadd.f32 %v1835, %v2683
  %2685 = vmatmul.bf16.gmra.mxu0 %v2397
  %v2686 = vpop.f32.mrf.mxu0
  %v2687 = vadd.f32 %v1840, %v2686
  %v2688 = vpop.f32.mrf.mxu0
  %v2689 = vadd.f32 %v1845, %v2688
  %2690 = vmatmul.bf16.gmra.mxu0 %v2401
  %v2691 = vpop.f32.mrf.mxu0
  %v2692 = vadd.f32 %v1850, %v2691
  %v2693 = vpop.f32.mrf.mxu0
  %v2694 = vadd.f32 %v1855, %v2693
  %2695 = vmatmul.bf16.gmra.mxu0 %v2405
  %v2696 = vpop.f32.mrf.mxu0
  %v2697 = vadd.f32 %v1860, %v2696
  %v2698 = vpop.f32.mrf.mxu0
  %v2699 = vadd.f32 %v1865, %v2698
  %2700 = vmatmul.bf16.gmra.mxu0 %v2409
  %v2701 = vpop.f32.mrf.mxu0
  %v2702 = vadd.f32 %v1870, %v2701
  %v2703 = vpop.f32.mrf.mxu0
  %v2704 = vadd.f32 %v1875, %v2703
  %2705 = vmatmul.bf16.gmra.mxu0 %v2413
  %v2706 = vpop.f32.mrf.mxu0
  %v2707 = vadd.f32 %v1880, %v2706
  %v2708 = vpop.f32.mrf.mxu0
  %v2709 = vadd.f32 %v1885, %v2708
  %2710 = vmatmul.bf16.gmra.mxu0 %v2417
  %v2711 = vpop.f32.mrf.mxu0
  %v2712 = vadd.f32 %v1890, %v2711
  %v2713 = vpop.f32.mrf.mxu0
  %v2714 = vadd.f32 %v1895, %v2713
  %2715 = vmatmul.bf16.gmra.mxu0 %v2421
  %v2716 = vpop.f32.mrf.mxu0
  %v2717 = vadd.f32 %v1900, %v2716
  %v2718 = vpop.f32.mrf.mxu0
  %v2719 = vadd.f32 %v1905, %v2718
  %2720 = vmatmul.bf16.gmra.mxu0 %v2425
  %v2721 = vpop.f32.mrf.mxu0
  %v2722 = vadd.f32 %v1910, %v2721
  %v2723 = vpop.f32.mrf.mxu0
  %v2724 = vadd.f32 %v1915, %v2723
  %2725 = vdwg.mxu0
  %2726 = vmatpush.bf16.msra.mxu0 %v1516
  %2727 = vmatpush.bf16.msra.mxu0 %v1515
  %2728 = vmatpush.bf16.msra.mxu0 %v1514
  %2729 = vmatpush.bf16.msra.mxu0 %v1513
  %2730 = vmatpush.bf16.msra.mxu0 %v1512
  %2731 = vmatpush.bf16.msra.mxu0 %v1511
  %2732 = vmatpush.bf16.msra.mxu0 %v1510
  %2733 = vmatpush.bf16.msra.mxu0 %v1509
  %2734 = vmatmul.bf16.gmra.mxu0 %v2302
  %v2735 = vpop.f32.mrf.mxu0
  %v2736 = vadd.f32 %v2567, %v2735
  %v2737 = vpop.f32.mrf.mxu0
  %v2738 = vadd.f32 %v2569, %v2737
  %2739 = vmatmul.bf16.gmra.mxu0 %v2306
  %v2740 = vpop.f32.mrf.mxu0
  %v2741 = vadd.f32 %v2572, %v2740
  %v2742 = vpop.f32.mrf.mxu0
  %v2743 = vadd.f32 %v2574, %v2742
  %2744 = vmatmul.bf16.gmra.mxu0 %v2310
  %v2745 = vpop.f32.mrf.mxu0
  %v2746 = vadd.f32 %v2577, %v2745
  %v2747 = vpop.f32.mrf.mxu0
  %v2748 = vadd.f32 %v2579, %v2747
  %2749 = vmatmul.bf16.gmra.mxu0 %v2314
  %v2750 = vpop.f32.mrf.mxu0
  %v2751 = vadd.f32 %v2582, %v2750
  %v2752 = vpop.f32.mrf.mxu0
  %v2753 = vadd.f32 %v2584, %v2752
  %2754 = vmatmul.bf16.gmra.mxu0 %v2318
  %v2755 = vpop.f32.mrf.mxu0
  %v2756 = vadd.f32 %v2587, %v2755
  %v2757 = vpop.f32.mrf.mxu0
  %v2758 = vadd.f32 %v2589, %v2757
  %2759 = vmatmul.bf16.gmra.mxu0 %v2322
  %v2760 = vpop.f32.mrf.mxu0
  %v2761 = vadd.f32 %v2592, %v2760
  %v2762 = vpop.f32.mrf.mxu0
  %v2763 = vadd.f32 %v2594, %v2762
  %2764 = vmatmul.bf16.gmra.mxu0 %v2326
  %v2765 = vpop.f32.mrf.mxu0
  %v2766 = vadd.f32 %v2597, %v2765
  %v2767 = vpop.f32.mrf.mxu0
  %v2768 = vadd.f32 %v2599, %v2767
  %2769 = vmatmul.bf16.gmra.mxu0 %v2330
  %v2770 = vpop.f32.mrf.mxu0
  %v2771 = vadd.f32 %v2602, %v2770
  %v2772 = vpop.f32.mrf.mxu0
  %v2773 = vadd.f32 %v2604, %v2772
  %2774 = vmatmul.bf16.gmra.mxu0 %v2334
  %v2775 = vpop.f32.mrf.mxu0
  %v2776 = vadd.f32 %v2607, %v2775
  %v2777 = vpop.f32.mrf.mxu0
  %v2778 = vadd.f32 %v2609, %v2777
  %2779 = vmatmul.bf16.gmra.mxu0 %v2338
  %v2780 = vpop.f32.mrf.mxu0
  %v2781 = vadd.f32 %v2612, %v2780
  %v2782 = vpop.f32.mrf.mxu0
  %v2783 = vadd.f32 %v2614, %v2782
  %2784 = vmatmul.bf16.gmra.mxu0 %v2342
  %v2785 = vpop.f32.mrf.mxu0
  %v2786 = vadd.f32 %v2617, %v2785
  %v2787 = vpop.f32.mrf.mxu0
  %v2788 = vadd.f32 %v2619, %v2787
  %2789 = vmatmul.bf16.gmra.mxu0 %v2346
  %v2790 = vpop.f32.mrf.mxu0
  %v2791 = vadd.f32 %v2622, %v2790
  %v2792 = vpop.f32.mrf.mxu0
  %v2793 = vadd.f32 %v2624, %v2792
  %2794 = vmatmul.bf16.gmra.mxu0 %v2350
  %v2795 = vpop.f32.mrf.mxu0
  %v2796 = vadd.f32 %v2627, %v2795
  %v2797 = vpop.f32.mrf.mxu0
  %v2798 = vadd.f32 %v2629, %v2797
  %2799 = vmatmul.bf16.gmra.mxu0 %v2354
  %v2800 = vpop.f32.mrf.mxu0
  %v2801 = vadd.f32 %v2632, %v2800
  %v2802 = vpop.f32.mrf.mxu0
  %v2803 = vadd.f32 %v2634, %v2802
  %2804 = vmatmul.bf16.gmra.mxu0 %v2358
  %v2805 = vpop.f32.mrf.mxu0
  %v2806 = vadd.f32 %v2637, %v2805
  %v2807 = vpop.f32.mrf.mxu0
  %v2808 = vadd.f32 %v2639, %v2807
  %2809 = vmatmul.bf16.gmra.mxu0 %v2362
  %v2810 = vpop.f32.mrf.mxu0
  %v2811 = vadd.f32 %v2642, %v2810
  %v2812 = vpop.f32.mrf.mxu0
  %v2813 = vadd.f32 %v2644, %v2812
  %2814 = vmatmul.bf16.gmra.mxu0 %v2366
  %v2815 = vpop.f32.mrf.mxu0
  %v2816 = vadd.f32 %v2647, %v2815
  %v2817 = vpop.f32.mrf.mxu0
  %v2818 = vadd.f32 %v2649, %v2817
  %2819 = vmatmul.bf16.gmra.mxu0 %v2370
  %v2820 = vpop.f32.mrf.mxu0
  %v2821 = vadd.f32 %v2652, %v2820
  %v2822 = vpop.f32.mrf.mxu0
  %v2823 = vadd.f32 %v2654, %v2822
  %2824 = vmatmul.bf16.gmra.mxu0 %v2374
  %v2825 = vpop.f32.mrf.mxu0
  %v2826 = vadd.f32 %v2657, %v2825
  %v2827 = vpop.f32.mrf.mxu0
  %v2828 = vadd.f32 %v2659, %v2827
  %2829 = vmatmul.bf16.gmra.mxu0 %v2378
  %v2830 = vpop.f32.mrf.mxu0
  %v2831 = vadd.f32 %v2662, %v2830
  %v2832 = vpop.f32.mrf.mxu0
  %v2833 = vadd.f32 %v2664, %v2832
  %2834 = vmatmul.bf16.gmra.mxu0 %v2382
  %v2835 = vpop.f32.mrf.mxu0
  %v2836 = vadd.f32 %v2667, %v2835
  %v2837 = vpop.f32.mrf.mxu0
  %v2838 = vadd.f32 %v2669, %v2837
  %2839 = vmatmul.bf16.gmra.mxu0 %v2386
  %v2840 = vpop.f32.mrf.mxu0
  %v2841 = vadd.f32 %v2672, %v2840
  %v2842 = vpop.f32.mrf.mxu0
  %v2843 = vadd.f32 %v2674, %v2842
  %2844 = vmatmul.bf16.gmra.mxu0 %v2390
  %v2845 = vpop.f32.mrf.mxu0
  %v2846 = vadd.f32 %v2677, %v2845
  %v2847 = vpop.f32.mrf.mxu0
  %v2848 = vadd.f32 %v2679, %v2847
  %2849 = vmatmul.bf16.gmra.mxu0 %v2394
  %v2850 = vpop.f32.mrf.mxu0
  %v2851 = vadd.f32 %v2682, %v2850
  %v2852 = vpop.f32.mrf.mxu0
  %v2853 = vadd.f32 %v2684, %v2852
  %2854 = vmatmul.bf16.gmra.mxu0 %v2398
  %v2855 = vpop.f32.mrf.mxu0
  %v2856 = vadd.f32 %v2687, %v2855
  %v2857 = vpop.f32.mrf.mxu0
  %v2858 = vadd.f32 %v2689, %v2857
  %2859 = vmatmul.bf16.gmra.mxu0 %v2402
  %v2860 = vpop.f32.mrf.mxu0
  %v2861 = vadd.f32 %v2692, %v2860
  %v2862 = vpop.f32.mrf.mxu0
  %v2863 = vadd.f32 %v2694, %v2862
  %2864 = vmatmul.bf16.gmra.mxu0 %v2406
  %v2865 = vpop.f32.mrf.mxu0
  %v2866 = vadd.f32 %v2697, %v2865
  %v2867 = vpop.f32.mrf.mxu0
  %v2868 = vadd.f32 %v2699, %v2867
  %2869 = vmatmul.bf16.gmra.mxu0 %v2410
  %v2870 = vpop.f32.mrf.mxu0
  %v2871 = vadd.f32 %v2702, %v2870
  %v2872 = vpop.f32.mrf.mxu0
  %v2873 = vadd.f32 %v2704, %v2872
  %2874 = vmatmul.bf16.gmra.mxu0 %v2414
  %v2875 = vpop.f32.mrf.mxu0
  %v2876 = vadd.f32 %v2707, %v2875
  %v2877 = vpop.f32.mrf.mxu0
  %v2878 = vadd.f32 %v2709, %v2877
  %2879 = vmatmul.bf16.gmra.mxu0 %v2418
  %v2880 = vpop.f32.mrf.mxu0
  %v2881 = vadd.f32 %v2712, %v2880
  %v2882 = vpop.f32.mrf.mxu0
  %v2883 = vadd.f32 %v2714, %v2882
  %2884 = vmatmul.bf16.gmra.mxu0 %v2422
  %v2885 = vpop.f32.mrf.mxu0
  %v2886 = vadd.f32 %v2717, %v2885
  %v2887 = vpop.f32.mrf.mxu0
  %v2888 = vadd.f32 %v2719, %v2887
  %2889 = vmatmul.bf16.gmra.mxu0 %v2426
  %v2890 = vpop.f32.mrf.mxu0
  %v2891 = vadd.f32 %v2722, %v2890
  %v2892 = vpop.f32.mrf.mxu0
  %v2893 = vadd.f32 %v2724, %v2892
  %2894 = vdwg.mxu0
  %2895 = vmatpush.bf16.msra.mxu0 %v1524
  %2896 = vmatpush.bf16.msra.mxu0 %v1523
  %2897 = vmatpush.bf16.msra.mxu0 %v1522
  %2898 = vmatpush.bf16.msra.mxu0 %v1521
  %2899 = vmatpush.bf16.msra.mxu0 %v1520
  %2900 = vmatpush.bf16.msra.mxu0 %v1519
  %2901 = vmatpush.bf16.msra.mxu0 %v1518
  %2902 = vmatpush.bf16.msra.mxu0 %v1517
  %2903 = vmatmul.bf16.gmra.mxu0 %v2303
  %v2904 = vpop.f32.mrf.mxu0
  %v2905 = vadd.f32 %v2736, %v2904
  %v2906 = vpop.f32.mrf.mxu0
  %v2907 = vadd.f32 %v2738, %v2906
  %2908 = vmatmul.bf16.gmra.mxu0 %v2307
  %v2909 = vpop.f32.mrf.mxu0
  %v2910 = vadd.f32 %v2741, %v2909
  %v2911 = vpop.f32.mrf.mxu0
  %v2912 = vadd.f32 %v2743, %v2911
  %2913 = vmatmul.bf16.gmra.mxu0 %v2311
  %v2914 = vpop.f32.mrf.mxu0
  %v2915 = vadd.f32 %v2746, %v2914
  %v2916 = vpop.f32.mrf.mxu0
  %v2917 = vadd.f32 %v2748, %v2916
  %2918 = vmatmul.bf16.gmra.mxu0 %v2315
  %v2919 = vpop.f32.mrf.mxu0
  %v2920 = vadd.f32 %v2751, %v2919
  %v2921 = vpop.f32.mrf.mxu0
  %v2922 = vadd.f32 %v2753, %v2921
  %2923 = vmatmul.bf16.gmra.mxu0 %v2319
  %v2924 = vpop.f32.mrf.mxu0
  %v2925 = vadd.f32 %v2756, %v2924
  %v2926 = vpop.f32.mrf.mxu0
  %v2927 = vadd.f32 %v2758, %v2926
  %2928 = vmatmul.bf16.gmra.mxu0 %v2323
  %v2929 = vpop.f32.mrf.mxu0
  %v2930 = vadd.f32 %v2761, %v2929
  %v2931 = vpop.f32.mrf.mxu0
  %v2932 = vadd.f32 %v2763, %v2931
  %2933 = vmatmul.bf16.gmra.mxu0 %v2327
  %v2934 = vpop.f32.mrf.mxu0
  %v2935 = vadd.f32 %v2766, %v2934
  %v2936 = vpop.f32.mrf.mxu0
  %v2937 = vadd.f32 %v2768, %v2936
  %2938 = vmatmul.bf16.gmra.mxu0 %v2331
  %v2939 = vpop.f32.mrf.mxu0
  %v2940 = vadd.f32 %v2771, %v2939
  %v2941 = vpop.f32.mrf.mxu0
  %v2942 = vadd.f32 %v2773, %v2941
  %2943 = vmatmul.bf16.gmra.mxu0 %v2335
  %v2944 = vpop.f32.mrf.mxu0
  %v2945 = vadd.f32 %v2776, %v2944
  %v2946 = vpop.f32.mrf.mxu0
  %v2947 = vadd.f32 %v2778, %v2946
  %2948 = vmatmul.bf16.gmra.mxu0 %v2339
  %v2949 = vpop.f32.mrf.mxu0
  %v2950 = vadd.f32 %v2781, %v2949
  %v2951 = vpop.f32.mrf.mxu0
  %v2952 = vadd.f32 %v2783, %v2951
  %2953 = vmatmul.bf16.gmra.mxu0 %v2343
  %v2954 = vpop.f32.mrf.mxu0
  %v2955 = vadd.f32 %v2786, %v2954
  %v2956 = vpop.f32.mrf.mxu0
  %v2957 = vadd.f32 %v2788, %v2956
  %2958 = vmatmul.bf16.gmra.mxu0 %v2347
  %v2959 = vpop.f32.mrf.mxu0
  %v2960 = vadd.f32 %v2791, %v2959
  %v2961 = vpop.f32.mrf.mxu0
  %v2962 = vadd.f32 %v2793, %v2961
  %2963 = vmatmul.bf16.gmra.mxu0 %v2351
  %v2964 = vpop.f32.mrf.mxu0
  %v2965 = vadd.f32 %v2796, %v2964
  %v2966 = vpop.f32.mrf.mxu0
  %v2967 = vadd.f32 %v2798, %v2966
  %2968 = vmatmul.bf16.gmra.mxu0 %v2355
  %v2969 = vpop.f32.mrf.mxu0
  %v2970 = vadd.f32 %v2801, %v2969
  %v2971 = vpop.f32.mrf.mxu0
  %v2972 = vadd.f32 %v2803, %v2971
  %2973 = vmatmul.bf16.gmra.mxu0 %v2359
  %v2974 = vpop.f32.mrf.mxu0
  %v2975 = vadd.f32 %v2806, %v2974
  %v2976 = vpop.f32.mrf.mxu0
  %v2977 = vadd.f32 %v2808, %v2976
  %2978 = vmatmul.bf16.gmra.mxu0 %v2363
  %v2979 = vpop.f32.mrf.mxu0
  %v2980 = vadd.f32 %v2811, %v2979
  %v2981 = vpop.f32.mrf.mxu0
  %v2982 = vadd.f32 %v2813, %v2981
  %2983 = vmatmul.bf16.gmra.mxu0 %v2367
  %v2984 = vpop.f32.mrf.mxu0
  %v2985 = vadd.f32 %v2816, %v2984
  %v2986 = vpop.f32.mrf.mxu0
  %v2987 = vadd.f32 %v2818, %v2986
  %2988 = vmatmul.bf16.gmra.mxu0 %v2371
  %v2989 = vpop.f32.mrf.mxu0
  %v2990 = vadd.f32 %v2821, %v2989
  %v2991 = vpop.f32.mrf.mxu0
  %v2992 = vadd.f32 %v2823, %v2991
  %2993 = vmatmul.bf16.gmra.mxu0 %v2375
  %v2994 = vpop.f32.mrf.mxu0
  %v2995 = vadd.f32 %v2826, %v2994
  %v2996 = vpop.f32.mrf.mxu0
  %v2997 = vadd.f32 %v2828, %v2996
  %2998 = vmatmul.bf16.gmra.mxu0 %v2379
  %v2999 = vpop.f32.mrf.mxu0
  %v3000 = vadd.f32 %v2831, %v2999
  %v3001 = vpop.f32.mrf.mxu0
  %v3002 = vadd.f32 %v2833, %v3001
  %3003 = vmatmul.bf16.gmra.mxu0 %v2383
  %v3004 = vpop.f32.mrf.mxu0
  %v3005 = vadd.f32 %v2836, %v3004
  %v3006 = vpop.f32.mrf.mxu0
  %v3007 = vadd.f32 %v2838, %v3006
  %3008 = vmatmul.bf16.gmra.mxu0 %v2387
  %v3009 = vpop.f32.mrf.mxu0
  %v3010 = vadd.f32 %v2841, %v3009
  %v3011 = vpop.f32.mrf.mxu0
  %v3012 = vadd.f32 %v2843, %v3011
  %3013 = vmatmul.bf16.gmra.mxu0 %v2391
  %v3014 = vpop.f32.mrf.mxu0
  %v3015 = vadd.f32 %v2846, %v3014
  %v3016 = vpop.f32.mrf.mxu0
  %v3017 = vadd.f32 %v2848, %v3016
  %3018 = vmatmul.bf16.gmra.mxu0 %v2395
  %v3019 = vpop.f32.mrf.mxu0
  %v3020 = vadd.f32 %v2851, %v3019
  %v3021 = vpop.f32.mrf.mxu0
  %v3022 = vadd.f32 %v2853, %v3021
  %3023 = vmatmul.bf16.gmra.mxu0 %v2399
  %v3024 = vpop.f32.mrf.mxu0
  %v3025 = vadd.f32 %v2856, %v3024
  %v3026 = vpop.f32.mrf.mxu0
  %v3027 = vadd.f32 %v2858, %v3026
  %3028 = vmatmul.bf16.gmra.mxu0 %v2403
  %v3029 = vpop.f32.mrf.mxu0
  %v3030 = vadd.f32 %v2861, %v3029
  %v3031 = vpop.f32.mrf.mxu0
  %v3032 = vadd.f32 %v2863, %v3031
  %3033 = vmatmul.bf16.gmra.mxu0 %v2407
  %v3034 = vpop.f32.mrf.mxu0
  %v3035 = vadd.f32 %v2866, %v3034
  %v3036 = vpop.f32.mrf.mxu0
  %v3037 = vadd.f32 %v2868, %v3036
  %3038 = vmatmul.bf16.gmra.mxu0 %v2411
  %v3039 = vpop.f32.mrf.mxu0
  %v3040 = vadd.f32 %v2871, %v3039
  %v3041 = vpop.f32.mrf.mxu0
  %v3042 = vadd.f32 %v2873, %v3041
  %3043 = vmatmul.bf16.gmra.mxu0 %v2415
  %v3044 = vpop.f32.mrf.mxu0
  %v3045 = vadd.f32 %v2876, %v3044
  %v3046 = vpop.f32.mrf.mxu0
  %v3047 = vadd.f32 %v2878, %v3046
  %3048 = vmatmul.bf16.gmra.mxu0 %v2419
  %v3049 = vpop.f32.mrf.mxu0
  %v3050 = vadd.f32 %v2881, %v3049
  %v3051 = vpop.f32.mrf.mxu0
  %v3052 = vadd.f32 %v2883, %v3051
  %3053 = vmatmul.bf16.gmra.mxu0 %v2423
  %v3054 = vpop.f32.mrf.mxu0
  %v3055 = vadd.f32 %v2886, %v3054
  %v3056 = vpop.f32.mrf.mxu0
  %v3057 = vadd.f32 %v2888, %v3056
  %3058 = vmatmul.bf16.gmra.mxu0 %v2427
  %v3059 = vpop.f32.mrf.mxu0
  %v3060 = vadd.f32 %v2891, %v3059
  %v3061 = vpop.f32.mrf.mxu0
  %v3062 = vadd.f32 %v2893, %v3061
  %3063 = vdwg.mxu0
  %3064 = vmatpush.bf16.msra.mxu0 %v1532
  %3065 = vmatpush.bf16.msra.mxu0 %v1531
  %3066 = vmatpush.bf16.msra.mxu0 %v1530
  %3067 = vmatpush.bf16.msra.mxu0 %v1529
  %3068 = vmatpush.bf16.msra.mxu0 %v1528
  %3069 = vmatpush.bf16.msra.mxu0 %v1527
  %3070 = vmatpush.bf16.msra.mxu0 %v1526
  %3071 = vmatpush.bf16.msra.mxu0 %v1525
  %3072 = vmatmul.bf16.gmra.mxu0 %v2304
  %v3073 = vpop.f32.mrf.mxu0
  %v3074 = vadd.f32 %v2905, %v3073
  %v3075 = vpop.f32.mrf.mxu0
  %v3076 = vadd.f32 %v2907, %v3075
  %3077 = vmatmul.bf16.gmra.mxu0 %v2308
  %v3078 = vpop.f32.mrf.mxu0
  %v3079 = vadd.f32 %v2910, %v3078
  %v3080 = vpop.f32.mrf.mxu0
  %v3081 = vadd.f32 %v2912, %v3080
  %3082 = vmatmul.bf16.gmra.mxu0 %v2312
  %v3083 = vpop.f32.mrf.mxu0
  %v3084 = vadd.f32 %v2915, %v3083
  %v3085 = vpop.f32.mrf.mxu0
  %v3086 = vadd.f32 %v2917, %v3085
  %3087 = vmatmul.bf16.gmra.mxu0 %v2316
  %v3088 = vpop.f32.mrf.mxu0
  %v3089 = vadd.f32 %v2920, %v3088
  %v3090 = vpop.f32.mrf.mxu0
  %v3091 = vadd.f32 %v2922, %v3090
  %3092 = vmatmul.bf16.gmra.mxu0 %v2320
  %v3093 = vpop.f32.mrf.mxu0
  %v3094 = vadd.f32 %v2925, %v3093
  %v3095 = vpop.f32.mrf.mxu0
  %v3096 = vadd.f32 %v2927, %v3095
  %3097 = vmatmul.bf16.gmra.mxu0 %v2324
  %v3098 = vpop.f32.mrf.mxu0
  %v3099 = vadd.f32 %v2930, %v3098
  %v3100 = vpop.f32.mrf.mxu0
  %v3101 = vadd.f32 %v2932, %v3100
  %3102 = vmatmul.bf16.gmra.mxu0 %v2328
  %v3103 = vpop.f32.mrf.mxu0
  %v3104 = vadd.f32 %v2935, %v3103
  %v3105 = vpop.f32.mrf.mxu0
  %v3106 = vadd.f32 %v2937, %v3105
  %3107 = vmatmul.bf16.gmra.mxu0 %v2332
  %v3108 = vpop.f32.mrf.mxu0
  %v3109 = vadd.f32 %v2940, %v3108
  %v3110 = vpop.f32.mrf.mxu0
  %v3111 = vadd.f32 %v2942, %v3110
  %3112 = vmatmul.bf16.gmra.mxu0 %v2336
  %v3113 = vpop.f32.mrf.mxu0
  %v3114 = vadd.f32 %v2945, %v3113
  %v3115 = vpop.f32.mrf.mxu0
  %v3116 = vadd.f32 %v2947, %v3115
  %3117 = vmatmul.bf16.gmra.mxu0 %v2340
  %v3118 = vpop.f32.mrf.mxu0
  %v3119 = vadd.f32 %v2950, %v3118
  %v3120 = vpop.f32.mrf.mxu0
  %v3121 = vadd.f32 %v2952, %v3120
  %3122 = vmatmul.bf16.gmra.mxu0 %v2344
  %v3123 = vpop.f32.mrf.mxu0
  %v3124 = vadd.f32 %v2955, %v3123
  %v3125 = vpop.f32.mrf.mxu0
  %v3126 = vadd.f32 %v2957, %v3125
  %3127 = vmatmul.bf16.gmra.mxu0 %v2348
  %v3128 = vpop.f32.mrf.mxu0
  %v3129 = vadd.f32 %v2960, %v3128
  %v3130 = vpop.f32.mrf.mxu0
  %v3131 = vadd.f32 %v2962, %v3130
  %3132 = vmatmul.bf16.gmra.mxu0 %v2352
  %v3133 = vpop.f32.mrf.mxu0
  %v3134 = vadd.f32 %v2965, %v3133
  %v3135 = vpop.f32.mrf.mxu0
  %v3136 = vadd.f32 %v2967, %v3135
  %3137 = vmatmul.bf16.gmra.mxu0 %v2356
  %v3138 = vpop.f32.mrf.mxu0
  %v3139 = vadd.f32 %v2970, %v3138
  %v3140 = vpop.f32.mrf.mxu0
  %v3141 = vadd.f32 %v2972, %v3140
  %3142 = vmatmul.bf16.gmra.mxu0 %v2360
  %v3143 = vpop.f32.mrf.mxu0
  %v3144 = vadd.f32 %v2975, %v3143
  %v3145 = vpop.f32.mrf.mxu0
  %v3146 = vadd.f32 %v2977, %v3145
  %3147 = vmatmul.bf16.gmra.mxu0 %v2364
  %v3148 = vpop.f32.mrf.mxu0
  %v3149 = vadd.f32 %v2980, %v3148
  %v3150 = vpop.f32.mrf.mxu0
  %v3151 = vadd.f32 %v2982, %v3150
  %3152 = vmatmul.bf16.gmra.mxu0 %v2368
  %v3153 = vpop.f32.mrf.mxu0
  %v3154 = vadd.f32 %v2985, %v3153
  %v3155 = vpop.f32.mrf.mxu0
  %v3156 = vadd.f32 %v2987, %v3155
  %3157 = vmatmul.bf16.gmra.mxu0 %v2372
  %v3158 = vpop.f32.mrf.mxu0
  %v3159 = vadd.f32 %v2990, %v3158
  %v3160 = vpop.f32.mrf.mxu0
  %v3161 = vadd.f32 %v2992, %v3160
  %3162 = vmatmul.bf16.gmra.mxu0 %v2376
  %v3163 = vpop.f32.mrf.mxu0
  %v3164 = vadd.f32 %v2995, %v3163
  %v3165 = vpop.f32.mrf.mxu0
  %v3166 = vadd.f32 %v2997, %v3165
  %3167 = vmatmul.bf16.gmra.mxu0 %v2380
  %v3168 = vpop.f32.mrf.mxu0
  %v3169 = vadd.f32 %v3000, %v3168
  %v3170 = vpop.f32.mrf.mxu0
  %v3171 = vadd.f32 %v3002, %v3170
  %3172 = vmatmul.bf16.gmra.mxu0 %v2384
  %v3173 = vpop.f32.mrf.mxu0
  %v3174 = vadd.f32 %v3005, %v3173
  %v3175 = vpop.f32.mrf.mxu0
  %v3176 = vadd.f32 %v3007, %v3175
  %3177 = vmatmul.bf16.gmra.mxu0 %v2388
  %v3178 = vpop.f32.mrf.mxu0
  %v3179 = vadd.f32 %v3010, %v3178
  %v3180 = vpop.f32.mrf.mxu0
  %v3181 = vadd.f32 %v3012, %v3180
  %3182 = vmatmul.bf16.gmra.mxu0 %v2392
  %v3183 = vpop.f32.mrf.mxu0
  %v3184 = vadd.f32 %v3015, %v3183
  %v3185 = vpop.f32.mrf.mxu0
  %v3186 = vadd.f32 %v3017, %v3185
  %3187 = vmatmul.bf16.gmra.mxu0 %v2396
  %v3188 = vpop.f32.mrf.mxu0
  %v3189 = vadd.f32 %v3020, %v3188
  %v3190 = vpop.f32.mrf.mxu0
  %v3191 = vadd.f32 %v3022, %v3190
  %3192 = vmatmul.bf16.gmra.mxu0 %v2400
  %v3193 = vpop.f32.mrf.mxu0
  %v3194 = vadd.f32 %v3025, %v3193
  %v3195 = vpop.f32.mrf.mxu0
  %v3196 = vadd.f32 %v3027, %v3195
  %3197 = vmatmul.bf16.gmra.mxu0 %v2404
  %v3198 = vpop.f32.mrf.mxu0
  %v3199 = vadd.f32 %v3030, %v3198
  %v3200 = vpop.f32.mrf.mxu0
  %v3201 = vadd.f32 %v3032, %v3200
  %3202 = vmatmul.bf16.gmra.mxu0 %v2408
  %v3203 = vpop.f32.mrf.mxu0
  %v3204 = vadd.f32 %v3035, %v3203
  %v3205 = vpop.f32.mrf.mxu0
  %v3206 = vadd.f32 %v3037, %v3205
  %3207 = vmatmul.bf16.gmra.mxu0 %v2412
  %v3208 = vpop.f32.mrf.mxu0
  %v3209 = vadd.f32 %v3040, %v3208
  %v3210 = vpop.f32.mrf.mxu0
  %v3211 = vadd.f32 %v3042, %v3210
  %3212 = vmatmul.bf16.gmra.mxu0 %v2416
  %v3213 = vpop.f32.mrf.mxu0
  %v3214 = vadd.f32 %v3045, %v3213
  %v3215 = vpop.f32.mrf.mxu0
  %v3216 = vadd.f32 %v3047, %v3215
  %3217 = vmatmul.bf16.gmra.mxu0 %v2420
  %v3218 = vpop.f32.mrf.mxu0
  %v3219 = vadd.f32 %v3050, %v3218
  %v3220 = vpop.f32.mrf.mxu0
  %v3221 = vadd.f32 %v3052, %v3220
  %3222 = vmatmul.bf16.gmra.mxu0 %v2424
  %v3223 = vpop.f32.mrf.mxu0
  %v3224 = vadd.f32 %v3055, %v3223
  %v3225 = vpop.f32.mrf.mxu0
  %v3226 = vadd.f32 %v3057, %v3225
  %3227 = vmatmul.bf16.gmra.mxu0 %v2428
  %v3228 = vpop.f32.mrf.mxu0
  %v3229 = vadd.f32 %v3060, %v3228
  %v3230 = vpop.f32.mrf.mxu0
  %v3231 = vadd.f32 %v3062, %v3230
  %3232 = vdwg.mxu0
  %v3233 = vmax.f32 %v3074, 0.0
  %v3234 = vmax.f32 %v3076, 0.0
  %v3235 = vmax.f32 %v3079, 0.0
  %v3236 = vmax.f32 %v3081, 0.0
  %v3237 = vmax.f32 %v3084, 0.0
  %v3238 = vmax.f32 %v3086, 0.0
  %v3239 = vmax.f32 %v3089, 0.0
  %v3240 = vmax.f32 %v3091, 0.0
  %v3241 = vmax.f32 %v3094, 0.0
  %v3242 = vmax.f32 %v3096, 0.0
  %v3243 = vmax.f32 %v3099, 0.0
  %v3244 = vmax.f32 %v3101, 0.0
  %v3245 = vmax.f32 %v3104, 0.0
  %v3246 = vmax.f32 %v3106, 0.0
  %v3247 = vmax.f32 %v3109, 0.0
  %v3248 = vmax.f32 %v3111, 0.0
  %v3249 = vmax.f32 %v3114, 0.0
  %v3250 = vmax.f32 %v3116, 0.0
  %v3251 = vmax.f32 %v3119, 0.0
  %v3252 = vmax.f32 %v3121, 0.0
  %v3253 = vmax.f32 %v3124, 0.0
  %v3254 = vmax.f32 %v3126, 0.0
  %v3255 = vmax.f32 %v3129, 0.0
  %v3256 = vmax.f32 %v3131, 0.0
  %v3257 = vmax.f32 %v3134, 0.0
  %v3258 = vmax.f32 %v3136, 0.0
  %v3259 = vmax.f32 %v3139, 0.0
  %v3260 = vmax.f32 %v3141, 0.0
  %v3261 = vmax.f32 %v3144, 0.0
  %v3262 = vmax.f32 %v3146, 0.0
  %v3263 = vmax.f32 %v3149, 0.0
  %v3264 = vmax.f32 %v3151, 0.0
  %v3265 = vmax.f32 %v3154, 0.0
  %v3266 = vmax.f32 %v3156, 0.0
  %v3267 = vmax.f32 %v3159, 0.0
  %v3268 = vmax.f32 %v3161, 0.0
  %v3269 = vmax.f32 %v3164, 0.0
  %v3270 = vmax.f32 %v3166, 0.0
  %v3271 = vmax.f32 %v3169, 0.0
  %v3272 = vmax.f32 %v3171, 0.0
  %v3273 = vmax.f32 %v3174, 0.0
  %v3274 = vmax.f32 %v3176, 0.0
  %v3275 = vmax.f32 %v3179, 0.0
  %v3276 = vmax.f32 %v3181, 0.0
  %v3277 = vmax.f32 %v3184, 0.0
  %v3278 = vmax.f32 %v3186, 0.0
  %v3279 = vmax.f32 %v3189, 0.0
  %v3280 = vmax.f32 %v3191, 0.0
  %v3281 = vmax.f32 %v3194, 0.0
  %v3282 = vmax.f32 %v3196, 0.0
  %v3283 = vmax.f32 %v3199, 0.0
  %v3284 = vmax.f32 %v3201, 0.0
  %v3285 = vmax.f32 %v3204, 0.0
  %v3286 = vmax.f32 %v3206, 0.0
  %v3287 = vmax.f32 %v3209, 0.0
  %v3288 = vmax.f32 %v3211, 0.0
  %v3289 = vmax.f32 %v3214, 0.0
  %v3290 = vmax.f32 %v3216, 0.0
  %v3291 = vmax.f32 %v3219, 0.0
  %v3292 = vmax.f32 %v3221, 0.0
  %v3293 = vmax.f32 %v3224, 0.0
  %v3294 = vmax.f32 %v3226, 0.0
  %v3295 = vmax.f32 %v3229, 0.0
  %v3296 = vmax.f32 %v3231, 0.0
  %v3297 = vld [vmem:[%s5] sm:$0xf]
  %v3298 = vpack.c.bf16 %v3234, %v3233
  %v3299 = vpack.c.bf16 %v3236, %v3235
  %v3300 = vpack.c.bf16 %v3238, %v3237
  %v3301 = vpack.c.bf16 %v3240, %v3239
  %v3302 = vpack.c.bf16 %v3242, %v3241
  %v3303 = vpack.c.bf16 %v3244, %v3243
  %v3304 = vpack.c.bf16 %v3246, %v3245
  %v3305 = vpack.c.bf16 %v3248, %v3247
  %v3306 = vpack.c.bf16 %v3250, %v3249
  %v3307 = vpack.c.bf16 %v3252, %v3251
  %v3308 = vpack.c.bf16 %v3254, %v3253
  %v3309 = vpack.c.bf16 %v3256, %v3255
  %v3310 = vpack.c.bf16 %v3258, %v3257
  %v3311 = vpack.c.bf16 %v3260, %v3259
  %v3312 = vpack.c.bf16 %v3262, %v3261
  %v3313 = vpack.c.bf16 %v3264, %v3263
  %v3314 = vpack.c.bf16 %v3266, %v3265
  %v3315 = vpack.c.bf16 %v3268, %v3267
  %v3316 = vpack.c.bf16 %v3270, %v3269
  %v3317 = vpack.c.bf16 %v3272, %v3271
  %v3318 = vpack.c.bf16 %v3274, %v3273
  %v3319 = vpack.c.bf16 %v3276, %v3275
  %v3320 = vpack.c.bf16 %v3278, %v3277
  %v3321 = vpack.c.bf16 %v3280, %v3279
  %v3322 = vpack.c.bf16 %v3282, %v3281
  %v3323 = vpack.c.bf16 %v3284, %v3283
  %v3324 = vpack.c.bf16 %v3286, %v3285
  %v3325 = vpack.c.bf16 %v3288, %v3287
  %v3326 = vpack.c.bf16 %v3290, %v3289
  %v3327 = vpack.c.bf16 %v3292, %v3291
  %v3328 = vpack.c.bf16 %v3294, %v3293
  %v3329 = vpack.c.bf16 %v3296, %v3295
  %v3330 = vld [vmem:[%s6] sm:$0x3]
  %3332 = vset.pattern.permute.xlu0 0
  %3333 = vperm.xlu0 %3332, %v3330
  %v3334 = vpop.permute.xlu0 %3333
  %3337 = vst [vmem:[#allocation1] ss:$9 sm:$0xff] %v3297
  %v3338 = vld [vmem:[#allocation1] sm:$0xff]
  %v3339 = vld [vmem:[#allocation1 + $0x9] sm:$0xff]
  %v3340 = vld [vmem:[#allocation1 + $0x12] sm:$0xff]
  %v3341 = vld [vmem:[#allocation1 + $0x1b] sm:$0xff]
  %3346 = vmatpush.bf16.msra.mxu0 %v3305
  %3347 = vmatpush.bf16.msra.mxu0 %v3304
  %3348 = vmatpush.bf16.msra.mxu0 %v3303
  %3349 = vmatpush.bf16.msra.mxu0 %v3302
  %3350 = vmatpush.bf16.msra.mxu0 %v3301
  %3351 = vmatpush.bf16.msra.mxu0 %v3300
  %3352 = vmatpush.bf16.msra.mxu0 %v3299
  %3353 = vmatpush.bf16.msra.mxu0 %v3298
  %3354 = vmatmul.bf16.gmra.mxu0 %v3338
  %v3355 = vpop.f32.mrf.mxu0
  %v3356 = vadd.f32 %v3334, %v3355
  %v3357 = vpop.f32.mrf.mxu0
  %3358 = vdwg.mxu0
  %3359 = vmatpush.bf16.msra.mxu0 %v3313
  %3360 = vmatpush.bf16.msra.mxu0 %v3312
  %3361 = vmatpush.bf16.msra.mxu0 %v3311
  %3362 = vmatpush.bf16.msra.mxu0 %v3310
  %3363 = vmatpush.bf16.msra.mxu0 %v3309
  %3364 = vmatpush.bf16.msra.mxu0 %v3308
  %3365 = vmatpush.bf16.msra.mxu0 %v3307
  %3366 = vmatpush.bf16.msra.mxu0 %v3306
  %3367 = vmatmul.bf16.gmra.mxu0 %v3339
  %v3368 = vpop.f32.mrf.mxu0
  %v3369 = vadd.f32 %v3356, %v3368
  %v3370 = vpop.f32.mrf.mxu0
  %3371 = vdwg.mxu0
  %3372 = vmatpush.bf16.msra.mxu0 %v3321
  %3373 = vmatpush.bf16.msra.mxu0 %v3320
  %3374 = vmatpush.bf16.msra.mxu0 %v3319
  %3375 = vmatpush.bf16.msra.mxu0 %v3318
  %3376 = vmatpush.bf16.msra.mxu0 %v3317
  %3377 = vmatpush.bf16.msra.mxu0 %v3316
  %3378 = vmatpush.bf16.msra.mxu0 %v3315
  %3379 = vmatpush.bf16.msra.mxu0 %v3314
  %3380 = vmatmul.bf16.gmra.mxu0 %v3340
  %v3381 = vpop.f32.mrf.mxu0
  %v3382 = vadd.f32 %v3369, %v3381
  %v3383 = vpop.f32.mrf.mxu0
  %3384 = vdwg.mxu0
  %3385 = vmatpush.bf16.msra.mxu0 %v3329
  %3386 = vmatpush.bf16.msra.mxu0 %v3328
  %3387 = vmatpush.bf16.msra.mxu0 %v3327
  %3388 = vmatpush.bf16.msra.mxu0 %v3326
  %3389 = vmatpush.bf16.msra.mxu0 %v3325
  %3390 = vmatpush.bf16.msra.mxu0 %v3324
  %3391 = vmatpush.bf16.msra.mxu0 %v3323
  %3392 = vmatpush.bf16.msra.mxu0 %v3322
  %3393 = vmatmul.bf16.gmra.mxu0 %v3341
  %v3394 = vpop.f32.mrf.mxu0
  %v3395 = vadd.f32 %v3382, %v3394
  %v3396 = vpop.f32.mrf.mxu0
  %3397 = vdwg.mxu0
  %3398 = vst [vmem:[%s7] sm:$0x3] %v3395
  // Predicated region
  $region30: #{two_layer_forward.1} parent=0 // pred_check
    _
  $region31: #{two_layer_forward.1} parent=0 // pred_check_branch
    %3400 = sbr.rel (0) target = $region33
  $region32: #{two_layer_forward.1} parent=0 // pred_region
    _
  $region33: #{two_layer_forward.1} parent=0 // pred_fallthru
    _
  // Predicated region
  $region34: #{two_layer_forward.1} parent=0 // pred_check
    _
  $region35: #{two_layer_forward.1} parent=0 // pred_check_branch
    %3402 = sbr.rel (0) target = $region37
  $region36: #{two_layer_forward.1} parent=0 // pred_region
    _
  $region37: #{two_layer_forward.1} parent=0 // pred_fallthru
    _

</llo_original>
